<compile_context>
chip_gen: v6e
topology: v6e:2x2x1
jax: 0.10.0
libtpu: 0.0.40
codegen_flags: <defaults>
</compile_context>

<pallas_src>
import functools

import jax
import jax.numpy as jnp
from jax import lax
from jax.experimental import pallas as pl
from jax.experimental.pallas import tpu as pltpu


def _round_up(x, m):
    return (x + m - 1) // m * m


def _mlp_kernel(idx_ref, w_emb_ref, w1_ref, b1_ref,
                wh_ref, bh_ref, gamma_ref, beta_ref,
                w_out_ref, b_out_ref, o_ref,
                *, block_size, n_hidden_layers, batch, eps):
    # idx_ref:   (B, T)        int32
    # w_emb_ref: (Vp, Ep)      f32   (zero-padded embedding table)
    # w1_ref:    (T, Ep, Hp)   f32   (first Linear, split per token position)
    # b1_ref:    (1, Hp)       f32
    # wh_ref:    (L, Hp, Hp)   f32   (hidden Linear weights)
    # bh_ref:    (L, 1, Hp)    f32
    # gamma_ref/beta_ref: (L, 1, Hp) f32 (BatchNorm affine params)
    # w_out_ref: (Hp, Op)      f32
    # b_out_ref: (1, Op)       f32
    # o_ref:     (B, Op)       f32
    B = batch
    idx = idx_ref[...]                                   # (B, T) int32
    w_emb = w_emb_ref[...]                               # (Vp, Ep)
    Vp = w_emb.shape[0]
    Hp = w1_ref.shape[2]

    # Hoisted out of the per-position loop (broadcast_in_dim is not CSE'd by JAX).
    vocab_iota = lax.broadcasted_iota(jnp.int32, (B, Vp), 1)   # (B, Vp)

    # --- Embedding lookup fused with the first Linear ---------------------------------------
    # emb[b, t] = W_emb[idx[b, t]]  and  h1 = flatten(emb) @ W1 + b1
    # implemented (same math, no reshape/gather) as  h1 = sum_t (onehot_t @ W_emb) @ W1[t] + b1
    acc = jnp.zeros((B, Hp), dtype=jnp.float32)
    for t in range(block_size):                               # unrolled: T is small & static
        ids_t = idx[:, t:t + 1]                               # (B, 1)
        onehot_t = (ids_t == vocab_iota).astype(jnp.float32)  # (B, Vp)  lane-dense
        emb_t = jnp.dot(onehot_t, w_emb,
                        preferred_element_type=jnp.float32)   # (B, Ep)  exact row select
        acc = acc + jnp.dot(emb_t, w1_ref[t],
                            preferred_element_type=jnp.float32)
    h = acc + b1_ref[...]                                     # (B, Hp)

    # --- (n_layers - 2) x [Linear -> BatchNorm1d(training stats) -> Tanh] --------------------
    inv_nm1 = 1.0 / float(B - 1)    # torch.var default is unbiased (ddof = 1)
    for l in range(n_hidden_layers):
        z = jnp.dot(h, wh_ref[l], preferred_element_type=jnp.float32) + bh_ref[l]  # (B, Hp)
        mean = jnp.mean(z, axis=0, keepdims=True)                                   # (1, Hp)
        diff = z - mean
        var = jnp.sum(diff * diff, axis=0, keepdims=True) * inv_nm1                 # (1, Hp)
        xhat = diff * lax.rsqrt(var + eps)                                          # EUP rsqrt
        h = jnp.tanh(gamma_ref[l] * xhat + beta_ref[l])                             # EUP tanh

    # --- Final Linear (logits). Padded columns are exactly zero; sliced off in the wrapper. --
    o_ref[...] = (jnp.dot(h, w_out_ref[...], preferred_element_type=jnp.float32)
                  + b_out_ref[...])


def init_mlp_params(key, vocab_size, block_size, n_embed, n_hidden, n_layers):
    """Matches the PyTorch module's init: randn/sqrt(fan_in) weights, zero biases,
    BN gamma=1 / beta=0, last-layer weight scaled by 0.1."""
    assert n_layers >= 3
    L = n_layers - 2
    keys = jax.random.split(key, 2 + L + 1)
    f32 = jnp.float32
    w_emb = jax.random.normal(keys[0], (vocab_size, n_embed), f32)
    fan1 = n_embed * block_size
    w1 = jax.random.normal(keys[1], (fan1, n_hidden), f32) / fan1 ** 0.5
    b1 = jnp.zeros((n_hidden,), f32)
    wh = [jax.random.normal(keys[2 + l], (n_hidden, n_hidden), f32) / n_hidden ** 0.5
          for l in range(L)]
    bh = [jnp.zeros((n_hidden,), f32) for _ in range(L)]
    gamma = [jnp.ones((n_hidden,), f32) for _ in range(L)]
    beta = [jnp.zeros((n_hidden,), f32) for _ in range(L)]
    w_out = jax.random.normal(keys[2 + L], (n_hidden, vocab_size), f32) / n_hidden ** 0.5 * 0.1
    b_out = jnp.zeros((vocab_size,), f32)
    return dict(w_emb=w_emb, w1=w1, b1=b1, wh=wh, bh=bh,
                gamma=gamma, beta=beta, w_out=w_out, b_out=b_out)


def mlp_forward(idx, params, *, vocab_size, block_size, n_embed, n_hidden, n_layers,
                y=None, eps=1e-5):
    """Forward pass of the MLP module. Returns (logits, loss) like the PyTorch forward."""
    B, T = idx.shape
    assert T == block_size
    L = n_layers - 2
    V, E, H = vocab_size, n_embed, n_hidden
    Vp = _round_up(V, 128)
    Ep = _round_up(E, 128)
    Hp = _round_up(H, 128)
    Op = _round_up(V, 128)
    f32 = jnp.float32

    # Zero-pad every feature dim to a multiple of 128 (lane-dense matmuls / unmasked stores).
    w_emb_p = jnp.zeros((Vp, Ep), f32).at[:V, :E].set(params['w_emb'])
    w1_p = jnp.zeros((T, Ep, Hp), f32).at[:, :E, :H].set(params['w1'].reshape(T, E, H))
    b1_p = jnp.zeros((1, Hp), f32).at[0, :H].set(params['b1'])
    wh_p = jnp.zeros((L, Hp, Hp), f32).at[:, :H, :H].set(jnp.stack(params['wh']))
    bh_p = jnp.zeros((L, 1, Hp), f32).at[:, 0, :H].set(jnp.stack(params['bh']))
    gamma_p = jnp.zeros((L, 1, Hp), f32).at[:, 0, :H].set(jnp.stack(params['gamma']))
    beta_p = jnp.zeros((L, 1, Hp), f32).at[:, 0, :H].set(jnp.stack(params['beta']))
    w_out_p = jnp.zeros((Hp, Op), f32).at[:H, :V].set(params['w_out'])
    b_out_p = jnp.zeros((1, Op), f32).at[0, :V].set(params['b_out'])

    kernel = functools.partial(_mlp_kernel, block_size=T, n_hidden_layers=L,
                               batch=B, eps=eps)
    vmem = pltpu.MemorySpace.VMEM
    logits_p = pl.pallas_call(
        kernel,
        out_shape=jax.ShapeDtypeStruct((B, Op), f32),
        in_specs=[pl.BlockSpec(memory_space=vmem)] * 10,
        out_specs=pl.BlockSpec(memory_space=vmem),
    )(idx.astype(jnp.int32), w_emb_p, w1_p, b1_p, wh_p, bh_p,
      gamma_p, beta_p, w_out_p, b_out_p)

    logits = logits_p[:, :V]
    if y is None:
        loss = None
    else:
        # TODO(synk): cross-entropy loss is computed in plain JAX here, not in the Pallas kernel.
        logz = jax.nn.logsumexp(logits, axis=-1)
        picked = jnp.take_along_axis(logits, y[:, None], axis=-1)[:, 0]
        loss = jnp.mean(logz - picked)
    return logits, loss


def _reference_forward(idx, params, *, n_layers, eps=1e-5, y=None):
    """Pure-JAX mirror of the PyTorch module (training-mode BatchNorm, unbiased var)."""
    L = n_layers - 2
    emb = params['w_emb'][idx]                        # (B, T, E)
    x = emb.reshape(idx.shape[0], -1)                 # (B, T*E)
    x = x @ params['w1'] + params['b1']
    for l in range(L):
        h = x @ params['wh'][l] + params['bh'][l]
        mean = h.mean(axis=0, keepdims=True)
        var = jnp.var(h, axis=0, keepdims=True, ddof=1)   # torch.var default: unbiased
        xhat = (h - mean) / jnp.sqrt(var + eps)
        x = jnp.tanh(params['gamma'][l] * xhat + params['beta'][l])
    logits = x @ params['w_out'] + params['b_out']
    if y is None:
        return logits, None
    logz = jax.nn.logsumexp(logits, axis=-1)
    picked = jnp.take_along_axis(logits, y[:, None], axis=-1)[:, 0]
    return logits, jnp.mean(logz - picked)


if __name__ == "__main__":
    # Small shapes consistent with the module.
    vocab_size, block_size, n_embed, n_hidden, n_layers = 32, 8, 8, 32, 4
    batch = 4

    key = jax.random.PRNGKey(0)
    kp, kx, ky = jax.random.split(key, 3)
    params = init_mlp_params(kp, vocab_size, block_size, n_embed, n_hidden, n_layers)
    idx = jax.random.randint(kx, (batch, block_size), 0, vocab_size, dtype=jnp.int32)
    y = jax.random.randint(ky, (batch,), 0, vocab_size, dtype=jnp.int32)

    # Forward with y=None (loss is None), as in MLP.forward.
    out, loss = mlp_forward(idx, params, vocab_size=vocab_size, block_size=block_size,
                            n_embed=n_embed, n_hidden=n_hidden, n_layers=n_layers, y=None)
    out = jax.block_until_ready(out)
    ref_out, _ = _reference_forward(idx, params, n_layers=n_layers, y=None)

    assert out.shape == (batch, vocab_size)
    assert loss is None
    assert jnp.allclose(out, ref_out, atol=1e-4, rtol=1e-4)

    # Also exercise the (out, loss) path with labels.
    out2, loss2 = mlp_forward(idx, params, vocab_size=vocab_size, block_size=block_size,
                              n_embed=n_embed, n_hidden=n_hidden, n_layers=n_layers, y=y)
    loss2 = jax.block_until_ready(loss2)
    ref_out2, ref_loss2 = _reference_forward(idx, params, n_layers=n_layers, y=y)
    assert jnp.allclose(out2, ref_out2, atol=1e-4, rtol=1e-4)
    assert jnp.allclose(loss2, ref_loss2, atol=1e-5, rtol=1e-5)

    print("KERNEL_OK")
</pallas_src>

<mosaic_0001>
module attributes {stable_mosaic.version = 11 : i64} {
  func.func @_mlp_kernel(%arg0: memref<4x8xi32, #tpu.memory_space<vmem>>, %arg1: memref<128x128xf32, #tpu.memory_space<vmem>>, %arg2: memref<8x128x128xf32, #tpu.memory_space<vmem>>, %arg3: memref<1x128xf32, #tpu.memory_space<vmem>>, %arg4: memref<2x128x128xf32, #tpu.memory_space<vmem>>, %arg5: memref<2x1x128xf32, #tpu.memory_space<vmem>>, %arg6: memref<2x1x128xf32, #tpu.memory_space<vmem>>, %arg7: memref<2x1x128xf32, #tpu.memory_space<vmem>>, %arg8: memref<128x128xf32, #tpu.memory_space<vmem>>, %arg9: memref<1x128xf32, #tpu.memory_space<vmem>>, %arg10: memref<4x128xf32, #tpu.memory_space<vmem>>) attributes {dimension_semantics = [], scalar_prefetch = 0 : i64, scratch_operands = 0 : i64, tpu.core_type = #tpu.core_type<tc>} {
    %c0 = arith.constant 0 : index
    %c0_0 = arith.constant 0 : index
    %0 = vector.load %arg0[%c0, %c0_0] : memref<4x8xi32, #tpu.memory_space<vmem>>, vector<4x8xi32>
    %c0_1 = arith.constant 0 : index
    %c0_2 = arith.constant 0 : index
    %1 = vector.load %arg1[%c0_1, %c0_2] : memref<128x128xf32, #tpu.memory_space<vmem>>, vector<128x128xf32>
    %2 = tpu.iota {dimensions = array<i32: 1>} : vector<4x128xi32>
    %cst = arith.constant 0.000000e+00 : f32
    %3 = vector.broadcast %cst : f32 to vector<4x128xf32>
    %4 = vector.extract_strided_slice %0 {offsets = [0, 0], sizes = [4, 1], strides = [1, 1]} : vector<4x8xi32> to vector<4x1xi32>
    %5 = vector.broadcast %4 : vector<4x1xi32> to vector<4x128xi32>
    %6 = arith.cmpi eq, %5, %2 : vector<4x128xi32>
    %7 = arith.extui %6 : vector<4x128xi1> to vector<4x128xi32>
    %8 = arith.sitofp %7 : vector<4x128xi32> to vector<4x128xf32>
    %cst_3 = arith.constant dense<0.000000e+00> : vector<4x128xf32>
    %9 = tpu.matmul %8, %1, %cst_3 {dimension_numbers = #tpu.dot_dimension_numbers<[1], [0], [0], [1], [0, 0, 1, 1], [], []>} : vector<4x128xf32>, vector<128x128xf32>, vector<4x128xf32> -> vector<4x128xf32>
    %c0_4 = arith.constant 0 : index
    %c0_5 = arith.constant 0 : index
    %c0_6 = arith.constant 0 : index
    %10 = vector.load %arg2[%c0_4, %c0_5, %c0_6] : memref<8x128x128xf32, #tpu.memory_space<vmem>>, vector<1x128x128xf32>
    %11 = vector.shape_cast %10 : vector<1x128x128xf32> to vector<128x128xf32>
    %cst_7 = arith.constant dense<0.000000e+00> : vector<4x128xf32>
    %12 = tpu.matmul %9, %11, %cst_7 {dimension_numbers = #tpu.dot_dimension_numbers<[1], [0], [0], [1], [0, 0, 1, 1], [], []>} : vector<4x128xf32>, vector<128x128xf32>, vector<4x128xf32> -> vector<4x128xf32>
    %13 = arith.addf %3, %12 : vector<4x128xf32>
    %14 = vector.extract_strided_slice %0 {offsets = [0, 1], sizes = [4, 1], strides = [1, 1]} : vector<4x8xi32> to vector<4x1xi32>
    %15 = vector.broadcast %14 : vector<4x1xi32> to vector<4x128xi32>
    %16 = arith.cmpi eq, %15, %2 : vector<4x128xi32>
    %17 = arith.extui %16 : vector<4x128xi1> to vector<4x128xi32>
    %18 = arith.sitofp %17 : vector<4x128xi32> to vector<4x128xf32>
    %cst_8 = arith.constant dense<0.000000e+00> : vector<4x128xf32>
    %19 = tpu.matmul %18, %1, %cst_8 {dimension_numbers = #tpu.dot_dimension_numbers<[1], [0], [0], [1], [0, 0, 1, 1], [], []>} : vector<4x128xf32>, vector<128x128xf32>, vector<4x128xf32> -> vector<4x128xf32>
    %c1 = arith.constant 1 : index
    %c0_9 = arith.constant 0 : index
    %c0_10 = arith.constant 0 : index
    %20 = vector.load %arg2[%c1, %c0_9, %c0_10] : memref<8x128x128xf32, #tpu.memory_space<vmem>>, vector<1x128x128xf32>
    %21 = vector.shape_cast %20 : vector<1x128x128xf32> to vector<128x128xf32>
    %cst_11 = arith.constant dense<0.000000e+00> : vector<4x128xf32>
    %22 = tpu.matmul %19, %21, %cst_11 {dimension_numbers = #tpu.dot_dimension_numbers<[1], [0], [0], [1], [0, 0, 1, 1], [], []>} : vector<4x128xf32>, vector<128x128xf32>, vector<4x128xf32> -> vector<4x128xf32>
    %23 = arith.addf %13, %22 : vector<4x128xf32>
    %24 = vector.extract_strided_slice %0 {offsets = [0, 2], sizes = [4, 1], strides = [1, 1]} : vector<4x8xi32> to vector<4x1xi32>
    %25 = vector.broadcast %24 : vector<4x1xi32> to vector<4x128xi32>
    %26 = arith.cmpi eq, %25, %2 : vector<4x128xi32>
    %27 = arith.extui %26 : vector<4x128xi1> to vector<4x128xi32>
    %28 = arith.sitofp %27 : vector<4x128xi32> to vector<4x128xf32>
    %cst_12 = arith.constant dense<0.000000e+00> : vector<4x128xf32>
    %29 = tpu.matmul %28, %1, %cst_12 {dimension_numbers = #tpu.dot_dimension_numbers<[1], [0], [0], [1], [0, 0, 1, 1], [], []>} : vector<4x128xf32>, vector<128x128xf32>, vector<4x128xf32> -> vector<4x128xf32>
    %c2 = arith.constant 2 : index
    %c0_13 = arith.constant 0 : index
    %c0_14 = arith.constant 0 : index
    %30 = vector.load %arg2[%c2, %c0_13, %c0_14] : memref<8x128x128xf32, #tpu.memory_space<vmem>>, vector<1x128x128xf32>
    %31 = vector.shape_cast %30 : vector<1x128x128xf32> to vector<128x128xf32>
    %cst_15 = arith.constant dense<0.000000e+00> : vector<4x128xf32>
    %32 = tpu.matmul %29, %31, %cst_15 {dimension_numbers = #tpu.dot_dimension_numbers<[1], [0], [0], [1], [0, 0, 1, 1], [], []>} : vector<4x128xf32>, vector<128x128xf32>, vector<4x128xf32> -> vector<4x128xf32>
    %33 = arith.addf %23, %32 : vector<4x128xf32>
    %34 = vector.extract_strided_slice %0 {offsets = [0, 3], sizes = [4, 1], strides = [1, 1]} : vector<4x8xi32> to vector<4x1xi32>
    %35 = vector.broadcast %34 : vector<4x1xi32> to vector<4x128xi32>
    %36 = arith.cmpi eq, %35, %2 : vector<4x128xi32>
    %37 = arith.extui %36 : vector<4x128xi1> to vector<4x128xi32>
    %38 = arith.sitofp %37 : vector<4x128xi32> to vector<4x128xf32>
    %cst_16 = arith.constant dense<0.000000e+00> : vector<4x128xf32>
    %39 = tpu.matmul %38, %1, %cst_16 {dimension_numbers = #tpu.dot_dimension_numbers<[1], [0], [0], [1], [0, 0, 1, 1], [], []>} : vector<4x128xf32>, vector<128x128xf32>, vector<4x128xf32> -> vector<4x128xf32>
    %c3 = arith.constant 3 : index
    %c0_17 = arith.constant 0 : index
    %c0_18 = arith.constant 0 : index
    %40 = vector.load %arg2[%c3, %c0_17, %c0_18] : memref<8x128x128xf32, #tpu.memory_space<vmem>>, vector<1x128x128xf32>
    %41 = vector.shape_cast %40 : vector<1x128x128xf32> to vector<128x128xf32>
    %cst_19 = arith.constant dense<0.000000e+00> : vector<4x128xf32>
    %42 = tpu.matmul %39, %41, %cst_19 {dimension_numbers = #tpu.dot_dimension_numbers<[1], [0], [0], [1], [0, 0, 1, 1], [], []>} : vector<4x128xf32>, vector<128x128xf32>, vector<4x128xf32> -> vector<4x128xf32>
    %43 = arith.addf %33, %42 : vector<4x128xf32>
    %44 = vector.extract_strided_slice %0 {offsets = [0, 4], sizes = [4, 1], strides = [1, 1]} : vector<4x8xi32> to vector<4x1xi32>
    %45 = vector.broadcast %44 : vector<4x1xi32> to vector<4x128xi32>
    %46 = arith.cmpi eq, %45, %2 : vector<4x128xi32>
    %47 = arith.extui %46 : vector<4x128xi1> to vector<4x128xi32>
    %48 = arith.sitofp %47 : vector<4x128xi32> to vector<4x128xf32>
    %cst_20 = arith.constant dense<0.000000e+00> : vector<4x128xf32>
    %49 = tpu.matmul %48, %1, %cst_20 {dimension_numbers = #tpu.dot_dimension_numbers<[1], [0], [0], [1], [0, 0, 1, 1], [], []>} : vector<4x128xf32>, vector<128x128xf32>, vector<4x128xf32> -> vector<4x128xf32>
    %c4 = arith.constant 4 : index
    %c0_21 = arith.constant 0 : index
    %c0_22 = arith.constant 0 : index
    %50 = vector.load %arg2[%c4, %c0_21, %c0_22] : memref<8x128x128xf32, #tpu.memory_space<vmem>>, vector<1x128x128xf32>
    %51 = vector.shape_cast %50 : vector<1x128x128xf32> to vector<128x128xf32>
    %cst_23 = arith.constant dense<0.000000e+00> : vector<4x128xf32>
    %52 = tpu.matmul %49, %51, %cst_23 {dimension_numbers = #tpu.dot_dimension_numbers<[1], [0], [0], [1], [0, 0, 1, 1], [], []>} : vector<4x128xf32>, vector<128x128xf32>, vector<4x128xf32> -> vector<4x128xf32>
    %53 = arith.addf %43, %52 : vector<4x128xf32>
    %54 = vector.extract_strided_slice %0 {offsets = [0, 5], sizes = [4, 1], strides = [1, 1]} : vector<4x8xi32> to vector<4x1xi32>
    %55 = vector.broadcast %54 : vector<4x1xi32> to vector<4x128xi32>
    %56 = arith.cmpi eq, %55, %2 : vector<4x128xi32>
    %57 = arith.extui %56 : vector<4x128xi1> to vector<4x128xi32>
    %58 = arith.sitofp %57 : vector<4x128xi32> to vector<4x128xf32>
    %cst_24 = arith.constant dense<0.000000e+00> : vector<4x128xf32>
    %59 = tpu.matmul %58, %1, %cst_24 {dimension_numbers = #tpu.dot_dimension_numbers<[1], [0], [0], [1], [0, 0, 1, 1], [], []>} : vector<4x128xf32>, vector<128x128xf32>, vector<4x128xf32> -> vector<4x128xf32>
    %c5 = arith.constant 5 : index
    %c0_25 = arith.constant 0 : index
    %c0_26 = arith.constant 0 : index
    %60 = vector.load %arg2[%c5, %c0_25, %c0_26] : memref<8x128x128xf32, #tpu.memory_space<vmem>>, vector<1x128x128xf32>
    %61 = vector.shape_cast %60 : vector<1x128x128xf32> to vector<128x128xf32>
    %cst_27 = arith.constant dense<0.000000e+00> : vector<4x128xf32>
    %62 = tpu.matmul %59, %61, %cst_27 {dimension_numbers = #tpu.dot_dimension_numbers<[1], [0], [0], [1], [0, 0, 1, 1], [], []>} : vector<4x128xf32>, vector<128x128xf32>, vector<4x128xf32> -> vector<4x128xf32>
    %63 = arith.addf %53, %62 : vector<4x128xf32>
    %64 = vector.extract_strided_slice %0 {offsets = [0, 6], sizes = [4, 1], strides = [1, 1]} : vector<4x8xi32> to vector<4x1xi32>
    %65 = vector.broadcast %64 : vector<4x1xi32> to vector<4x128xi32>
    %66 = arith.cmpi eq, %65, %2 : vector<4x128xi32>
    %67 = arith.extui %66 : vector<4x128xi1> to vector<4x128xi32>
    %68 = arith.sitofp %67 : vector<4x128xi32> to vector<4x128xf32>
    %cst_28 = arith.constant dense<0.000000e+00> : vector<4x128xf32>
    %69 = tpu.matmul %68, %1, %cst_28 {dimension_numbers = #tpu.dot_dimension_numbers<[1], [0], [0], [1], [0, 0, 1, 1], [], []>} : vector<4x128xf32>, vector<128x128xf32>, vector<4x128xf32> -> vector<4x128xf32>
    %c6 = arith.constant 6 : index
    %c0_29 = arith.constant 0 : index
    %c0_30 = arith.constant 0 : index
    %70 = vector.load %arg2[%c6, %c0_29, %c0_30] : memref<8x128x128xf32, #tpu.memory_space<vmem>>, vector<1x128x128xf32>
    %71 = vector.shape_cast %70 : vector<1x128x128xf32> to vector<128x128xf32>
    %cst_31 = arith.constant dense<0.000000e+00> : vector<4x128xf32>
    %72 = tpu.matmul %69, %71, %cst_31 {dimension_numbers = #tpu.dot_dimension_numbers<[1], [0], [0], [1], [0, 0, 1, 1], [], []>} : vector<4x128xf32>, vector<128x128xf32>, vector<4x128xf32> -> vector<4x128xf32>
    %73 = arith.addf %63, %72 : vector<4x128xf32>
    %74 = vector.extract_strided_slice %0 {offsets = [0, 7], sizes = [4, 1], strides = [1, 1]} : vector<4x8xi32> to vector<4x1xi32>
    %75 = vector.broadcast %74 : vector<4x1xi32> to vector<4x128xi32>
    %76 = arith.cmpi eq, %75, %2 : vector<4x128xi32>
    %77 = arith.extui %76 : vector<4x128xi1> to vector<4x128xi32>
    %78 = arith.sitofp %77 : vector<4x128xi32> to vector<4x128xf32>
    %cst_32 = arith.constant dense<0.000000e+00> : vector<4x128xf32>
    %79 = tpu.matmul %78, %1, %cst_32 {dimension_numbers = #tpu.dot_dimension_numbers<[1], [0], [0], [1], [0, 0, 1, 1], [], []>} : vector<4x128xf32>, vector<128x128xf32>, vector<4x128xf32> -> vector<4x128xf32>
    %c7 = arith.constant 7 : index
    %c0_33 = arith.constant 0 : index
    %c0_34 = arith.constant 0 : index
    %80 = vector.load %arg2[%c7, %c0_33, %c0_34] : memref<8x128x128xf32, #tpu.memory_space<vmem>>, vector<1x128x128xf32>
    %81 = vector.shape_cast %80 : vector<1x128x128xf32> to vector<128x128xf32>
    %cst_35 = arith.constant dense<0.000000e+00> : vector<4x128xf32>
    %82 = tpu.matmul %79, %81, %cst_35 {dimension_numbers = #tpu.dot_dimension_numbers<[1], [0], [0], [1], [0, 0, 1, 1], [], []>} : vector<4x128xf32>, vector<128x128xf32>, vector<4x128xf32> -> vector<4x128xf32>
    %83 = arith.addf %73, %82 : vector<4x128xf32>
    %c0_36 = arith.constant 0 : index
    %c0_37 = arith.constant 0 : index
    %84 = vector.load %arg3[%c0_36, %c0_37] : memref<1x128xf32, #tpu.memory_space<vmem>>, vector<1x128xf32>
    %85 = vector.broadcast %84 : vector<1x128xf32> to vector<4x128xf32>
    %86 = arith.addf %83, %85 : vector<4x128xf32>
    %c0_38 = arith.constant 0 : index
    %c0_39 = arith.constant 0 : index
    %c0_40 = arith.constant 0 : index
    %87 = vector.load %arg4[%c0_38, %c0_39, %c0_40] : memref<2x128x128xf32, #tpu.memory_space<vmem>>, vector<1x128x128xf32>
    %88 = vector.shape_cast %87 : vector<1x128x128xf32> to vector<128x128xf32>
    %cst_41 = arith.constant dense<0.000000e+00> : vector<4x128xf32>
    %89 = tpu.matmul %86, %88, %cst_41 {dimension_numbers = #tpu.dot_dimension_numbers<[1], [0], [0], [1], [0, 0, 1, 1], [], []>} : vector<4x128xf32>, vector<128x128xf32>, vector<4x128xf32> -> vector<4x128xf32>
    %c0_42 = arith.constant 0 : index
    %c0_43 = arith.constant 0 : index
    %c0_44 = arith.constant 0 : index
    %90 = vector.load %arg5[%c0_42, %c0_43, %c0_44] : memref<2x1x128xf32, #tpu.memory_space<vmem>>, vector<1x1x128xf32>
    %91 = vector.shape_cast %90 : vector<1x1x128xf32> to vector<1x128xf32>
    %92 = vector.broadcast %91 : vector<1x128xf32> to vector<4x128xf32>
    %93 = arith.addf %89, %92 : vector<4x128xf32>
    %cst_45 = arith.constant dense<0.000000e+00> : vector<128xf32>
    %94 = vector.multi_reduction <add>, %93, %cst_45 [0] : vector<4x128xf32> to vector<128xf32>
    %95 = vector.shape_cast %94 : vector<128xf32> to vector<1x128xf32>
    %cst_46 = arith.constant 4.000000e+00 : f32
    %96 = vector.broadcast %cst_46 : f32 to vector<1x128xf32>
    %97 = arith.divf %95, %96 : vector<1x128xf32>
    %98 = vector.broadcast %97 : vector<1x128xf32> to vector<4x128xf32>
    %99 = arith.subf %93, %98 : vector<4x128xf32>
    %100 = arith.mulf %99, %99 : vector<4x128xf32>
    %cst_47 = arith.constant dense<0.000000e+00> : vector<128xf32>
    %101 = vector.multi_reduction <add>, %100, %cst_47 [0] : vector<4x128xf32> to vector<128xf32>
    %102 = vector.shape_cast %101 : vector<128xf32> to vector<1x128xf32>
    %cst_48 = arith.constant 0.333333343 : f32
    %103 = vector.broadcast %cst_48 : f32 to vector<1x128xf32>
    %104 = arith.mulf %102, %103 : vector<1x128xf32>
    %cst_49 = arith.constant 9.99999974E-6 : f32
    %105 = vector.broadcast %cst_49 : f32 to vector<1x128xf32>
    %106 = arith.addf %104, %105 : vector<1x128xf32>
    %107 = math.rsqrt %106 : vector<1x128xf32>
    %108 = vector.broadcast %107 : vector<1x128xf32> to vector<4x128xf32>
    %109 = arith.mulf %99, %108 : vector<4x128xf32>
    %c0_50 = arith.constant 0 : index
    %c0_51 = arith.constant 0 : index
    %c0_52 = arith.constant 0 : index
    %110 = vector.load %arg6[%c0_50, %c0_51, %c0_52] : memref<2x1x128xf32, #tpu.memory_space<vmem>>, vector<1x1x128xf32>
    %111 = vector.shape_cast %110 : vector<1x1x128xf32> to vector<1x128xf32>
    %112 = vector.broadcast %111 : vector<1x128xf32> to vector<4x128xf32>
    %113 = arith.mulf %112, %109 : vector<4x128xf32>
    %c0_53 = arith.constant 0 : index
    %c0_54 = arith.constant 0 : index
    %c0_55 = arith.constant 0 : index
    %114 = vector.load %arg7[%c0_53, %c0_54, %c0_55] : memref<2x1x128xf32, #tpu.memory_space<vmem>>, vector<1x1x128xf32>
    %115 = vector.shape_cast %114 : vector<1x1x128xf32> to vector<1x128xf32>
    %116 = vector.broadcast %115 : vector<1x128xf32> to vector<4x128xf32>
    %117 = arith.addf %113, %116 : vector<4x128xf32>
    %118 = math.tanh %117 : vector<4x128xf32>
    %c1_56 = arith.constant 1 : index
    %c0_57 = arith.constant 0 : index
    %c0_58 = arith.constant 0 : index
    %119 = vector.load %arg4[%c1_56, %c0_57, %c0_58] : memref<2x128x128xf32, #tpu.memory_space<vmem>>, vector<1x128x128xf32>
    %120 = vector.shape_cast %119 : vector<1x128x128xf32> to vector<128x128xf32>
    %cst_59 = arith.constant dense<0.000000e+00> : vector<4x128xf32>
    %121 = tpu.matmul %118, %120, %cst_59 {dimension_numbers = #tpu.dot_dimension_numbers<[1], [0], [0], [1], [0, 0, 1, 1], [], []>} : vector<4x128xf32>, vector<128x128xf32>, vector<4x128xf32> -> vector<4x128xf32>
    %c1_60 = arith.constant 1 : index
    %c0_61 = arith.constant 0 : index
    %c0_62 = arith.constant 0 : index
    %122 = vector.load %arg5[%c1_60, %c0_61, %c0_62] : memref<2x1x128xf32, #tpu.memory_space<vmem>>, vector<1x1x128xf32>
    %123 = vector.shape_cast %122 : vector<1x1x128xf32> to vector<1x128xf32>
    %124 = vector.broadcast %123 : vector<1x128xf32> to vector<4x128xf32>
    %125 = arith.addf %121, %124 : vector<4x128xf32>
    %cst_63 = arith.constant dense<0.000000e+00> : vector<128xf32>
    %126 = vector.multi_reduction <add>, %125, %cst_63 [0] : vector<4x128xf32> to vector<128xf32>
    %127 = vector.shape_cast %126 : vector<128xf32> to vector<1x128xf32>
    %cst_64 = arith.constant 4.000000e+00 : f32
    %128 = vector.broadcast %cst_64 : f32 to vector<1x128xf32>
    %129 = arith.divf %127, %128 : vector<1x128xf32>
    %130 = vector.broadcast %129 : vector<1x128xf32> to vector<4x128xf32>
    %131 = arith.subf %125, %130 : vector<4x128xf32>
    %132 = arith.mulf %131, %131 : vector<4x128xf32>
    %cst_65 = arith.constant dense<0.000000e+00> : vector<128xf32>
    %133 = vector.multi_reduction <add>, %132, %cst_65 [0] : vector<4x128xf32> to vector<128xf32>
    %134 = vector.shape_cast %133 : vector<128xf32> to vector<1x128xf32>
    %cst_66 = arith.constant 0.333333343 : f32
    %135 = vector.broadcast %cst_66 : f32 to vector<1x128xf32>
    %136 = arith.mulf %134, %135 : vector<1x128xf32>
    %cst_67 = arith.constant 9.99999974E-6 : f32
    %137 = vector.broadcast %cst_67 : f32 to vector<1x128xf32>
    %138 = arith.addf %136, %137 : vector<1x128xf32>
    %139 = math.rsqrt %138 : vector<1x128xf32>
    %140 = vector.broadcast %139 : vector<1x128xf32> to vector<4x128xf32>
    %141 = arith.mulf %131, %140 : vector<4x128xf32>
    %c1_68 = arith.constant 1 : index
    %c0_69 = arith.constant 0 : index
    %c0_70 = arith.constant 0 : index
    %142 = vector.load %arg6[%c1_68, %c0_69, %c0_70] : memref<2x1x128xf32, #tpu.memory_space<vmem>>, vector<1x1x128xf32>
    %143 = vector.shape_cast %142 : vector<1x1x128xf32> to vector<1x128xf32>
    %144 = vector.broadcast %143 : vector<1x128xf32> to vector<4x128xf32>
    %145 = arith.mulf %144, %141 : vector<4x128xf32>
    %c1_71 = arith.constant 1 : index
    %c0_72 = arith.constant 0 : index
    %c0_73 = arith.constant 0 : index
    %146 = vector.load %arg7[%c1_71, %c0_72, %c0_73] : memref<2x1x128xf32, #tpu.memory_space<vmem>>, vector<1x1x128xf32>
    %147 = vector.shape_cast %146 : vector<1x1x128xf32> to vector<1x128xf32>
    %148 = vector.broadcast %147 : vector<1x128xf32> to vector<4x128xf32>
    %149 = arith.addf %145, %148 : vector<4x128xf32>
    %150 = math.tanh %149 : vector<4x128xf32>
    %c0_74 = arith.constant 0 : index
    %c0_75 = arith.constant 0 : index
    %151 = vector.load %arg8[%c0_74, %c0_75] : memref<128x128xf32, #tpu.memory_space<vmem>>, vector<128x128xf32>
    %cst_76 = arith.constant dense<0.000000e+00> : vector<4x128xf32>
    %152 = tpu.matmul %150, %151, %cst_76 {dimension_numbers = #tpu.dot_dimension_numbers<[1], [0], [0], [1], [0, 0, 1, 1], [], []>} : vector<4x128xf32>, vector<128x128xf32>, vector<4x128xf32> -> vector<4x128xf32>
    %c0_77 = arith.constant 0 : index
    %c0_78 = arith.constant 0 : index
    %153 = vector.load %arg9[%c0_77, %c0_78] : memref<1x128xf32, #tpu.memory_space<vmem>>, vector<1x128xf32>
    %154 = vector.broadcast %153 : vector<1x128xf32> to vector<4x128xf32>
    %155 = arith.addf %152, %154 : vector<4x128xf32>
    %c0_79 = arith.constant 0 : index
    %c0_80 = arith.constant 0 : index
    %156 = vector.load %arg10[%c0_79, %c0_80] : memref<4x128xf32, #tpu.memory_space<vmem>>, vector<4x128xf32>
    tpu.vector_store %arg10[%c0_79, %c0_80], %155 {strides = array<i32>} : memref<4x128xf32, #tpu.memory_space<vmem>>, vector<4x128xf32>,
    return
  }
}

</mosaic_0001>

<llo_original>
// kernel: tpu_custom_call.1
$region0: #{tpu_custom_call.1}
  #allocation0 [shape = 'u32[]', space=smem, size = 0x4, offset = 0x4, fixed_abs, tag = 'smem constant byte address 0x4 - core index']
  #allocation1 [shape = 'u32[144,128]{1,0:T(1,128)}', space=vmem, size = 0x12000, scoped, tag = 'internal scratch']
  %s0 = inlined_call_operand.hbm [shape: s32[4,8], index: 0, kind: input, shape index: {}]
  %s1 = inlined_call_operand.hbm [shape: f32[128,128], index: 1, kind: input, shape index: {}]
  %s2 = inlined_call_operand.hbm [shape: f32[8,128,128], index: 2, kind: input, shape index: {}]
  %s3 = inlined_call_operand.vmem [shape: f32[1,128], index: 3, kind: input, shape index: {}]
  %s4 = inlined_call_operand.hbm [shape: f32[2,128,128], index: 4, kind: input, shape index: {}]
  %s5 = inlined_call_operand.vmem [shape: f32[2,1,128], index: 5, kind: input, shape index: {}]
  %s6 = inlined_call_operand.vmem [shape: f32[2,1,128], index: 6, kind: input, shape index: {}]
  %s7 = inlined_call_operand.vmem [shape: f32[2,1,128], index: 7, kind: input, shape index: {}]
  %s8 = inlined_call_operand.hbm [shape: f32[128,128], index: 8, kind: input, shape index: {}]
  %s9 = inlined_call_operand.vmem [shape: f32[1,128], index: 9, kind: input, shape index: {}]
  %s10 = inlined_call_operand.hbm [shape: f32[4,128], index: 10, kind: output, shape index: {}]
  %s11 = sld [smem:[#allocation0]]
  $region70: #{tpu_custom_call.1} parent=0
    _
  %s13 = ssub.s32 1, %s11
  %s14 = scalar_select 0, %s13, %s11
  $region1: #{tpu_custom_call.1} parent=0
    #allocation2 [shape = 'u8[2048]{0}', space=vmem, size = 0x800, scoped, tag = 'input window, operand 0, single buffered']
    #allocation3 [shape = 's32[1]{0}', space=sflag, size = 0x4, scoped, tag = 'scoped memory for tpu_custom_call.1']
    #allocation4 [shape = 's32[1]{0}', space=sflag, size = 0x4, scoped, tag = 'scoped memory for tpu_custom_call.1']
    #allocation5 [shape = 'u8[65536]{0}', space=vmem, size = 0x10000, scoped, tag = 'input window, operand 1, single buffered']
    #allocation6 [shape = 's32[1]{0}', space=sflag, size = 0x4, scoped, tag = 'scoped memory for tpu_custom_call.1']
    #allocation7 [shape = 'u8[524288]{0}', space=vmem, size = 0x80000, scoped, tag = 'input window, operand 2, single buffered']
    #allocation8 [shape = 'u8[131072]{0}', space=vmem, size = 0x20000, scoped, tag = 'input window, operand 4, single buffered']
    #allocation9 [shape = 's32[1]{0}', space=sflag, size = 0x4, scoped, tag = 'scoped memory for tpu_custom_call.1']
    #allocation10 [shape = 'u8[65536]{0}', space=vmem, size = 0x10000, scoped, tag = 'input window, operand 8, single buffered']
    #allocation11 [shape = 'u8[2048]{0}', space=vmem, size = 0x800, scoped, tag = 'output window, operand 0, single buffered']
    %15 = vsyncpa [#allocation3], 0
    %16 = vsyncpa [#allocation6], 0
    %17 = vsyncpa [#allocation9], 0
    %18 = vsyncpa [#allocation4], 0
    // Predicated region
    $region2: #{tpu_custom_call.1} parent=1 // pred_check
      _
    $region3: #{tpu_custom_call.1} parent=1 // pred_check_branch
      %20 = sbr.rel (0) target = $region5
    $region4: #{tpu_custom_call.1} parent=1 // pred_region
      %s22 = ssub.s32 64, 64
      %23 = vsyncadd [#allocation3], %s22
      %s25 = sshll.u32 [#allocation2], 4
      %s26 = int_to_ptr.vmem [resolvable:$true] %s25
      %28 = dma.hbm_to_vmem [thread:$0]  %s0, 64, %s26, [#allocation3]
    $region5: #{tpu_custom_call.1} parent=1 // pred_fallthru
      _
    // Predicated region
    $region6: #{tpu_custom_call.1} parent=1 // pred_check
      _
    $region7: #{tpu_custom_call.1} parent=1 // pred_check_branch
      %30 = sbr.rel (0) target = $region9
    $region8: #{tpu_custom_call.1} parent=1 // pred_region
      %s32 = ssub.s32 2048, 2048
      %33 = vsyncadd [#allocation6], %s32
      %s34 = sshll.u32 [#allocation5], 4
      %s35 = int_to_ptr.vmem [resolvable:$true] %s34
      %40 = dma.hbm_to_vmem [thread:$0]  %s1, 2048, %s35, [#allocation6], 128, 128, 8
    $region9: #{tpu_custom_call.1} parent=1 // pred_fallthru
      _
    // Predicated region
    $region10: #{tpu_custom_call.1} parent=1 // pred_check
      _
    $region11: #{tpu_custom_call.1} parent=1 // pred_check_branch
      %42 = sbr.rel (0) target = $region13
    $region12: #{tpu_custom_call.1} parent=1 // pred_region
      %s44 = ssub.s32 16384, 16384
      %45 = vsyncadd [#allocation6], %s44
      %s46 = sshll.u32 [#allocation7], 4
      %s47 = int_to_ptr.vmem [resolvable:$true] %s46
      %52 = dma.hbm_to_vmem [thread:$0]  %s2, 16384, %s47, [#allocation6], 128, 128, 8
    $region13: #{tpu_custom_call.1} parent=1 // pred_fallthru
      _
    // Predicated region
    $region14: #{tpu_custom_call.1} parent=1 // pred_check
      _
    $region15: #{tpu_custom_call.1} parent=1 // pred_check_branch
      %54 = sbr.rel (0) target = $region17
    $region16: #{tpu_custom_call.1} parent=1 // pred_region
      _
    $region17: #{tpu_custom_call.1} parent=1 // pred_fallthru
      _
    // Predicated region
    $region18: #{tpu_custom_call.1} parent=1 // pred_check
      _
    $region19: #{tpu_custom_call.1} parent=1 // pred_check_branch
      %56 = sbr.rel (0) target = $region21
    $region20: #{tpu_custom_call.1} parent=1 // pred_region
      %s58 = ssub.s32 4096, 4096
      %59 = vsyncadd [#allocation9], %s58
      %s60 = sshll.u32 [#allocation8], 4
      %s61 = int_to_ptr.vmem [resolvable:$true] %s60
      %66 = dma.hbm_to_vmem [thread:$0]  %s4, 4096, %s61, [#allocation9], 128, 128, 8
    $region21: #{tpu_custom_call.1} parent=1 // pred_fallthru
      _
    // Predicated region
    $region22: #{tpu_custom_call.1} parent=1 // pred_check
      _
    $region23: #{tpu_custom_call.1} parent=1 // pred_check_branch
      %68 = sbr.rel (0) target = $region25
    $region24: #{tpu_custom_call.1} parent=1 // pred_region
      _
    $region25: #{tpu_custom_call.1} parent=1 // pred_fallthru
      _
    // Predicated region
    $region26: #{tpu_custom_call.1} parent=1 // pred_check
      _
    $region27: #{tpu_custom_call.1} parent=1 // pred_check_branch
      %70 = sbr.rel (0) target = $region29
    $region28: #{tpu_custom_call.1} parent=1 // pred_region
      _
    $region29: #{tpu_custom_call.1} parent=1 // pred_fallthru
      _
    // Predicated region
    $region30: #{tpu_custom_call.1} parent=1 // pred_check
      _
    $region31: #{tpu_custom_call.1} parent=1 // pred_check_branch
      %72 = sbr.rel (0) target = $region33
    $region32: #{tpu_custom_call.1} parent=1 // pred_region
      _
    $region33: #{tpu_custom_call.1} parent=1 // pred_fallthru
      _
    // Predicated region
    $region34: #{tpu_custom_call.1} parent=1 // pred_check
      _
    $region35: #{tpu_custom_call.1} parent=1 // pred_check_branch
      %74 = sbr.rel (0) target = $region37
    $region36: #{tpu_custom_call.1} parent=1 // pred_region
      %s76 = ssub.s32 2048, 2048
      %77 = vsyncadd [#allocation9], %s76
      %s78 = sshll.u32 [#allocation10], 4
      %s79 = int_to_ptr.vmem [resolvable:$true] %s78
      %84 = dma.hbm_to_vmem [thread:$0]  %s8, 2048, %s79, [#allocation9], 128, 128, 8
    $region37: #{tpu_custom_call.1} parent=1 // pred_fallthru
      _
    // Predicated region
    $region38: #{tpu_custom_call.1} parent=1 // pred_check
      _
    $region39: #{tpu_custom_call.1} parent=1 // pred_check_branch
      %86 = sbr.rel (0) target = $region41
    $region40: #{tpu_custom_call.1} parent=1 // pred_region
      _
    $region41: #{tpu_custom_call.1} parent=1 // pred_fallthru
      _
    // Predicated region
    $region42: #{tpu_custom_call.1} parent=1 // pred_check
      _
    $region43: #{tpu_custom_call.1} parent=1 // pred_check_branch
      %88 = sbr.rel (0) target = $region45
    $region44: #{tpu_custom_call.1} parent=1 // pred_region
      %89 = dma.done [#allocation3], 64
    $region45: #{tpu_custom_call.1} parent=1 // pred_fallthru
      _
    // Predicated region
    $region46: #{tpu_custom_call.1} parent=1 // pred_check
      _
    $region47: #{tpu_custom_call.1} parent=1 // pred_check_branch
      %91 = sbr.rel (0) target = $region49
    $region48: #{tpu_custom_call.1} parent=1 // pred_region
      %92 = dma.done [#allocation6], 2048
    $region49: #{tpu_custom_call.1} parent=1 // pred_fallthru
      _
    // Predicated region
    $region50: #{tpu_custom_call.1} parent=1 // pred_check
      _
    $region51: #{tpu_custom_call.1} parent=1 // pred_check_branch
      %94 = sbr.rel (0) target = $region53
    $region52: #{tpu_custom_call.1} parent=1 // pred_region
      %95 = dma.done [#allocation6], 16384
    $region53: #{tpu_custom_call.1} parent=1 // pred_fallthru
      _
    // Predicated region
    $region54: #{tpu_custom_call.1} parent=1 // pred_check
      _
    $region55: #{tpu_custom_call.1} parent=1 // pred_check_branch
      %97 = sbr.rel (0) target = $region57
    $region56: #{tpu_custom_call.1} parent=1 // pred_region
      %98 = dma.done [#allocation9], 4096
    $region57: #{tpu_custom_call.1} parent=1 // pred_fallthru
      _
    // Predicated region
    $region58: #{tpu_custom_call.1} parent=1 // pred_check
      _
    $region59: #{tpu_custom_call.1} parent=1 // pred_check_branch
      %100 = sbr.rel (0) target = $region61
    $region60: #{tpu_custom_call.1} parent=1 // pred_region
      %101 = dma.done [#allocation9], 2048
    $region61: #{tpu_custom_call.1} parent=1 // pred_fallthru
      _
    %v102 = vld [vmem:[#allocation2] sm:$0xf]
    %v103 = vld [vmem:[#allocation5] sm:$0xff]
    %v104 = vld [vmem:[#allocation5 + $0x8] sm:$0xff]
    %v105 = vld [vmem:[#allocation5 + $0x10] sm:$0xff]
    %v106 = vld [vmem:[#allocation5 + $0x18] sm:$0xff]
    %v107 = vld [vmem:[#allocation5 + $0x20] sm:$0xff]
    %v108 = vld [vmem:[#allocation5 + $0x28] sm:$0xff]
    %v109 = vld [vmem:[#allocation5 + $0x30] sm:$0xff]
    %v110 = vld [vmem:[#allocation5 + $0x38] sm:$0xff]
    %v111 = vld [vmem:[#allocation5 + $0x40] sm:$0xff]
    %v112 = vld [vmem:[#allocation5 + $0x48] sm:$0xff]
    %v113 = vld [vmem:[#allocation5 + $0x50] sm:$0xff]
    %v114 = vld [vmem:[#allocation5 + $0x58] sm:$0xff]
    %v115 = vld [vmem:[#allocation5 + $0x60] sm:$0xff]
    %v116 = vld [vmem:[#allocation5 + $0x68] sm:$0xff]
    %v117 = vld [vmem:[#allocation5 + $0x70] sm:$0xff]
    %v118 = vld [vmem:[#allocation5 + $0x78] sm:$0xff]
    %v119 = vlaneseq
    %v120 = vand.u32 %v119, 127
    %121 = vset.pattern.permute.xlu0 0
    %122 = vperm.xlu0 %121, %v102
    %v123 = vpop.permute.xlu0 %122
    %vm124 = vcmp.eq.s32.totalorder %v123, %v120
    %v125 = vsel %vm124, 1, 0
    %v126 = vcvt.s32.f32 %v125
    %127 = vmatprep.subr.mxu0 0.0
    %128 = vmatpush1.msra.mxu0 %v118
    %129 = vmatprep.subr.mxu0 0.0
    %130 = vmatpush1.msra.mxu0 %v117
    %131 = vmatprep.subr.mxu0 0.0
    %132 = vmatpush1.msra.mxu0 %v116
    %133 = vmatprep.subr.mxu0 0.0
    %134 = vmatpush1.msra.mxu0 %v115
    %135 = vmatprep.subr.mxu0 0.0
    %136 = vmatpush1.msra.mxu0 %v114
    %137 = vmatprep.subr.mxu0 0.0
    %138 = vmatpush1.msra.mxu0 %v113
    %139 = vmatprep.subr.mxu0 0.0
    %140 = vmatpush1.msra.mxu0 %v112
    %141 = vmatprep.subr.mxu0 0.0
    %142 = vmatpush1.msra.mxu0 %v111
    %143 = vmatprep.subr.mxu0 0.0
    %144 = vmatpush1.msra.mxu0 %v110
    %145 = vmatprep.subr.mxu0 0.0
    %146 = vmatpush1.msra.mxu0 %v109
    %147 = vmatprep.subr.mxu0 0.0
    %148 = vmatpush1.msra.mxu0 %v108
    %149 = vmatprep.subr.mxu0 0.0
    %150 = vmatpush1.msra.mxu0 %v107
    %151 = vmatprep.subr.mxu0 0.0
    %152 = vmatpush1.msra.mxu0 %v106
    %153 = vmatprep.subr.mxu0 0.0
    %154 = vmatpush1.msra.mxu0 %v105
    %155 = vmatprep.subr.mxu0 0.0
    %156 = vmatpush1.msra.mxu0 %v104
    %157 = vmatprep.subr.mxu0 0.0
    %158 = vmatpush1.msra.mxu0 %v103
    %159 = vmatprep.subr.mxu0 0.0
    %160 = vmatpush2.msra.mxu0 0.0
    %161 = vmatprep.subr.mxu0 0.0
    %162 = vmatpush2.msra.mxu0 0.0
    %163 = vmatprep.subr.mxu0 0.0
    %164 = vmatpush2.msra.mxu0 0.0
    %165 = vmatprep.subr.mxu0 0.0
    %166 = vmatpush2.msra.mxu0 0.0
    %167 = vmatprep.subr.mxu0 0.0
    %168 = vmatpush2.msra.mxu0 0.0
    %169 = vmatprep.subr.mxu0 0.0
    %170 = vmatpush2.msra.mxu0 0.0
    %171 = vmatprep.subr.mxu0 0.0
    %172 = vmatpush2.msra.mxu0 0.0
    %173 = vmatprep.subr.mxu0 0.0
    %174 = vmatpush2.msra.mxu0 0.0
    %175 = vmatprep.subr.mxu0 0.0
    %176 = vmatpush2.msra.mxu0 0.0
    %177 = vmatprep.subr.mxu0 0.0
    %178 = vmatpush2.msra.mxu0 0.0
    %179 = vmatprep.subr.mxu0 0.0
    %180 = vmatpush2.msra.mxu0 0.0
    %181 = vmatprep.subr.mxu0 0.0
    %182 = vmatpush2.msra.mxu0 0.0
    %183 = vmatprep.subr.mxu0 0.0
    %184 = vmatpush2.msra.mxu0 0.0
    %185 = vmatprep.subr.mxu0 0.0
    %186 = vmatpush2.msra.mxu0 0.0
    %187 = vmatprep.subr.mxu0 0.0
    %188 = vmatpush2.msra.mxu0 0.0
    %189 = vmatprep.subr.mxu0 0.0
    %190 = vmatpush2.msra.mxu0 0.0
    %191 = vmatprep.mubr.f32.mxu0 0.0
    %192 = vmatmul.mubr.f32.gmra.mxu0 %v126
    %v193 = vpop.f32.mrf.mxu0
    %v194 = vadd.f32 0.0, %v193
    %v195 = vpop.f32.mrf.mxu0
    %196 = vdwg.mxu0
    %v197 = vld [vmem:[#allocation7] sm:$0xff]
    %v198 = vld [vmem:[#allocation7 + $0x8] sm:$0xff]
    %v199 = vld [vmem:[#allocation7 + $0x10] sm:$0xff]
    %v200 = vld [vmem:[#allocation7 + $0x18] sm:$0xff]
    %v201 = vld [vmem:[#allocation7 + $0x20] sm:$0xff]
    %v202 = vld [vmem:[#allocation7 + $0x28] sm:$0xff]
    %v203 = vld [vmem:[#allocation7 + $0x30] sm:$0xff]
    %v204 = vld [vmem:[#allocation7 + $0x38] sm:$0xff]
    %v205 = vld [vmem:[#allocation7 + $0x40] sm:$0xff]
    %v206 = vld [vmem:[#allocation7 + $0x48] sm:$0xff]
    %v207 = vld [vmem:[#allocation7 + $0x50] sm:$0xff]
    %v208 = vld [vmem:[#allocation7 + $0x58] sm:$0xff]
    %v209 = vld [vmem:[#allocation7 + $0x60] sm:$0xff]
    %v210 = vld [vmem:[#allocation7 + $0x68] sm:$0xff]
    %v211 = vld [vmem:[#allocation7 + $0x70] sm:$0xff]
    %v212 = vld [vmem:[#allocation7 + $0x78] sm:$0xff]
    %213 = vset.pattern.permute.xlu0 1
    %214 = vperm.xlu0 %213, %v102
    %v215 = vpop.permute.xlu0 %214
    %vm216 = vcmp.eq.s32.totalorder %v215, %v120
    %v217 = vsel %vm216, 1, 0
    %v218 = vcvt.s32.f32 %v217
    %219 = vmatprep.subr.mxu0 0.0
    %220 = vmatpush1.msra.mxu0 %v118
    %221 = vmatprep.subr.mxu0 0.0
    %222 = vmatpush1.msra.mxu0 %v117
    %223 = vmatprep.subr.mxu0 0.0
    %224 = vmatpush1.msra.mxu0 %v116
    %225 = vmatprep.subr.mxu0 0.0
    %226 = vmatpush1.msra.mxu0 %v115
    %227 = vmatprep.subr.mxu0 0.0
    %228 = vmatpush1.msra.mxu0 %v114
    %229 = vmatprep.subr.mxu0 0.0
    %230 = vmatpush1.msra.mxu0 %v113
    %231 = vmatprep.subr.mxu0 0.0
    %232 = vmatpush1.msra.mxu0 %v112
    %233 = vmatprep.subr.mxu0 0.0
    %234 = vmatpush1.msra.mxu0 %v111
    %235 = vmatprep.subr.mxu0 0.0
    %236 = vmatpush1.msra.mxu0 %v110
    %237 = vmatprep.subr.mxu0 0.0
    %238 = vmatpush1.msra.mxu0 %v109
    %239 = vmatprep.subr.mxu0 0.0
    %240 = vmatpush1.msra.mxu0 %v108
    %241 = vmatprep.subr.mxu0 0.0
    %242 = vmatpush1.msra.mxu0 %v107
    %243 = vmatprep.subr.mxu0 0.0
    %244 = vmatpush1.msra.mxu0 %v106
    %245 = vmatprep.subr.mxu0 0.0
    %246 = vmatpush1.msra.mxu0 %v105
    %247 = vmatprep.subr.mxu0 0.0
    %248 = vmatpush1.msra.mxu0 %v104
    %249 = vmatprep.subr.mxu0 0.0
    %250 = vmatpush1.msra.mxu0 %v103
    %251 = vmatprep.subr.mxu0 0.0
    %252 = vmatpush2.msra.mxu0 0.0
    %253 = vmatprep.subr.mxu0 0.0
    %254 = vmatpush2.msra.mxu0 0.0
    %255 = vmatprep.subr.mxu0 0.0
    %256 = vmatpush2.msra.mxu0 0.0
    %257 = vmatprep.subr.mxu0 0.0
    %258 = vmatpush2.msra.mxu0 0.0
    %259 = vmatprep.subr.mxu0 0.0
    %260 = vmatpush2.msra.mxu0 0.0
    %261 = vmatprep.subr.mxu0 0.0
    %262 = vmatpush2.msra.mxu0 0.0
    %263 = vmatprep.subr.mxu0 0.0
    %264 = vmatpush2.msra.mxu0 0.0
    %265 = vmatprep.subr.mxu0 0.0
    %266 = vmatpush2.msra.mxu0 0.0
    %267 = vmatprep.subr.mxu0 0.0
    %268 = vmatpush2.msra.mxu0 0.0
    %269 = vmatprep.subr.mxu0 0.0
    %270 = vmatpush2.msra.mxu0 0.0
    %271 = vmatprep.subr.mxu0 0.0
    %272 = vmatpush2.msra.mxu0 0.0
    %273 = vmatprep.subr.mxu0 0.0
    %274 = vmatpush2.msra.mxu0 0.0
    %275 = vmatprep.subr.mxu0 0.0
    %276 = vmatpush2.msra.mxu0 0.0
    %277 = vmatprep.subr.mxu0 0.0
    %278 = vmatpush2.msra.mxu0 0.0
    %279 = vmatprep.subr.mxu0 0.0
    %280 = vmatpush2.msra.mxu0 0.0
    %281 = vmatprep.subr.mxu0 0.0
    %282 = vmatpush2.msra.mxu0 0.0
    %283 = vmatprep.mubr.f32.mxu0 0.0
    %284 = vmatmul.mubr.f32.gmra.mxu0 %v218
    %v285 = vpop.f32.mrf.mxu0
    %v286 = vadd.f32 0.0, %v285
    %v287 = vpop.f32.mrf.mxu0
    %288 = vdwg.mxu0
    %s289 = scalar_lea.vmem [#allocation7], 128
    %v290 = vld [vmem:[%s289] sm:$0xff]
    %v291 = vld [vmem:[%s289 + $0x8] sm:$0xff]
    %v292 = vld [vmem:[%s289 + $0x10] sm:$0xff]
    %v293 = vld [vmem:[%s289 + $0x18] sm:$0xff]
    %v294 = vld [vmem:[%s289 + $0x20] sm:$0xff]
    %v295 = vld [vmem:[%s289 + $0x28] sm:$0xff]
    %v296 = vld [vmem:[%s289 + $0x30] sm:$0xff]
    %v297 = vld [vmem:[%s289 + $0x38] sm:$0xff]
    %v298 = vld [vmem:[%s289 + $0x40] sm:$0xff]
    %v299 = vld [vmem:[%s289 + $0x48] sm:$0xff]
    %v300 = vld [vmem:[%s289 + $0x50] sm:$0xff]
    %v301 = vld [vmem:[%s289 + $0x58] sm:$0xff]
    %v302 = vld [vmem:[%s289 + $0x60] sm:$0xff]
    %v303 = vld [vmem:[%s289 + $0x68] sm:$0xff]
    %v304 = vld [vmem:[%s289 + $0x70] sm:$0xff]
    %v305 = vld [vmem:[%s289 + $0x78] sm:$0xff]
    %306 = vmatprep.subr.mxu0 0.0
    %307 = vmatpush1.msra.mxu0 %v305
    %308 = vmatprep.subr.mxu0 0.0
    %309 = vmatpush1.msra.mxu0 %v304
    %310 = vmatprep.subr.mxu0 0.0
    %311 = vmatpush1.msra.mxu0 %v303
    %312 = vmatprep.subr.mxu0 0.0
    %313 = vmatpush1.msra.mxu0 %v302
    %314 = vmatprep.subr.mxu0 0.0
    %315 = vmatpush1.msra.mxu0 %v301
    %316 = vmatprep.subr.mxu0 0.0
    %317 = vmatpush1.msra.mxu0 %v300
    %318 = vmatprep.subr.mxu0 0.0
    %319 = vmatpush1.msra.mxu0 %v299
    %320 = vmatprep.subr.mxu0 0.0
    %321 = vmatpush1.msra.mxu0 %v298
    %322 = vmatprep.subr.mxu0 0.0
    %323 = vmatpush1.msra.mxu0 %v297
    %324 = vmatprep.subr.mxu0 0.0
    %325 = vmatpush1.msra.mxu0 %v296
    %326 = vmatprep.subr.mxu0 0.0
    %327 = vmatpush1.msra.mxu0 %v295
    %328 = vmatprep.subr.mxu0 0.0
    %329 = vmatpush1.msra.mxu0 %v294
    %330 = vmatprep.subr.mxu0 0.0
    %331 = vmatpush1.msra.mxu0 %v293
    %332 = vmatprep.subr.mxu0 0.0
    %333 = vmatpush1.msra.mxu0 %v292
    %334 = vmatprep.subr.mxu0 0.0
    %335 = vmatpush1.msra.mxu0 %v291
    %336 = vmatprep.subr.mxu0 0.0
    %337 = vmatpush1.msra.mxu0 %v290
    %338 = vmatprep.subr.mxu0 0.0
    %339 = vmatpush2.msra.mxu0 0.0
    %340 = vmatprep.subr.mxu0 0.0
    %341 = vmatpush2.msra.mxu0 0.0
    %342 = vmatprep.subr.mxu0 0.0
    %343 = vmatpush2.msra.mxu0 0.0
    %344 = vmatprep.subr.mxu0 0.0
    %345 = vmatpush2.msra.mxu0 0.0
    %346 = vmatprep.subr.mxu0 0.0
    %347 = vmatpush2.msra.mxu0 0.0
    %348 = vmatprep.subr.mxu0 0.0
    %349 = vmatpush2.msra.mxu0 0.0
    %350 = vmatprep.subr.mxu0 0.0
    %351 = vmatpush2.msra.mxu0 0.0
    %352 = vmatprep.subr.mxu0 0.0
    %353 = vmatpush2.msra.mxu0 0.0
    %354 = vmatprep.subr.mxu0 0.0
    %355 = vmatpush2.msra.mxu0 0.0
    %356 = vmatprep.subr.mxu0 0.0
    %357 = vmatpush2.msra.mxu0 0.0
    %358 = vmatprep.subr.mxu0 0.0
    %359 = vmatpush2.msra.mxu0 0.0
    %360 = vmatprep.subr.mxu0 0.0
    %361 = vmatpush2.msra.mxu0 0.0
    %362 = vmatprep.subr.mxu0 0.0
    %363 = vmatpush2.msra.mxu0 0.0
    %364 = vmatprep.subr.mxu0 0.0
    %365 = vmatpush2.msra.mxu0 0.0
    %366 = vmatprep.subr.mxu0 0.0
    %367 = vmatpush2.msra.mxu0 0.0
    %368 = vmatprep.subr.mxu0 0.0
    %369 = vmatpush2.msra.mxu0 0.0
    %370 = vmatprep.mubr.f32.mxu0 0.0
    %371 = vmatmul.mubr.f32.gmra.mxu0 %v286
    %v372 = vpop.f32.mrf.mxu0
    %v373 = vadd.f32 0.0, %v372
    %v374 = vpop.f32.mrf.mxu0
    %375 = vdwg.mxu0
    %376 = vmatprep.subr.mxu0 0.0
    %377 = vmatpush1.msra.mxu0 %v212
    %378 = vmatprep.subr.mxu0 0.0
    %379 = vmatpush1.msra.mxu0 %v211
    %380 = vmatprep.subr.mxu0 0.0
    %381 = vmatpush1.msra.mxu0 %v210
    %382 = vmatprep.subr.mxu0 0.0
    %383 = vmatpush1.msra.mxu0 %v209
    %384 = vmatprep.subr.mxu0 0.0
    %385 = vmatpush1.msra.mxu0 %v208
    %386 = vmatprep.subr.mxu0 0.0
    %387 = vmatpush1.msra.mxu0 %v207
    %388 = vmatprep.subr.mxu0 0.0
    %389 = vmatpush1.msra.mxu0 %v206
    %390 = vmatprep.subr.mxu0 0.0
    %391 = vmatpush1.msra.mxu0 %v205
    %392 = vmatprep.subr.mxu0 0.0
    %393 = vmatpush1.msra.mxu0 %v204
    %394 = vmatprep.subr.mxu0 0.0
    %395 = vmatpush1.msra.mxu0 %v203
    %396 = vmatprep.subr.mxu0 0.0
    %397 = vmatpush1.msra.mxu0 %v202
    %398 = vmatprep.subr.mxu0 0.0
    %399 = vmatpush1.msra.mxu0 %v201
    %400 = vmatprep.subr.mxu0 0.0
    %401 = vmatpush1.msra.mxu0 %v200
    %402 = vmatprep.subr.mxu0 0.0
    %403 = vmatpush1.msra.mxu0 %v199
    %404 = vmatprep.subr.mxu0 0.0
    %405 = vmatpush1.msra.mxu0 %v198
    %406 = vmatprep.subr.mxu0 0.0
    %407 = vmatpush1.msra.mxu0 %v197
    %408 = vmatprep.subr.mxu0 0.0
    %409 = vmatpush2.msra.mxu0 0.0
    %410 = vmatprep.subr.mxu0 0.0
    %411 = vmatpush2.msra.mxu0 0.0
    %412 = vmatprep.subr.mxu0 0.0
    %413 = vmatpush2.msra.mxu0 0.0
    %414 = vmatprep.subr.mxu0 0.0
    %415 = vmatpush2.msra.mxu0 0.0
    %416 = vmatprep.subr.mxu0 0.0
    %417 = vmatpush2.msra.mxu0 0.0
    %418 = vmatprep.subr.mxu0 0.0
    %419 = vmatpush2.msra.mxu0 0.0
    %420 = vmatprep.subr.mxu0 0.0
    %421 = vmatpush2.msra.mxu0 0.0
    %422 = vmatprep.subr.mxu0 0.0
    %423 = vmatpush2.msra.mxu0 0.0
    %424 = vmatprep.subr.mxu0 0.0
    %425 = vmatpush2.msra.mxu0 0.0
    %426 = vmatprep.subr.mxu0 0.0
    %427 = vmatpush2.msra.mxu0 0.0
    %428 = vmatprep.subr.mxu0 0.0
    %429 = vmatpush2.msra.mxu0 0.0
    %430 = vmatprep.subr.mxu0 0.0
    %431 = vmatpush2.msra.mxu0 0.0
    %432 = vmatprep.subr.mxu0 0.0
    %433 = vmatpush2.msra.mxu0 0.0
    %434 = vmatprep.subr.mxu0 0.0
    %435 = vmatpush2.msra.mxu0 0.0
    %436 = vmatprep.subr.mxu0 0.0
    %437 = vmatpush2.msra.mxu0 0.0
    %438 = vmatprep.subr.mxu0 0.0
    %439 = vmatpush2.msra.mxu0 0.0
    %440 = vmatprep.mubr.f32.mxu0 0.0
    %441 = vmatmul.mubr.f32.gmra.mxu0 %v194
    %v442 = vpop.f32.mrf.mxu0
    %v443 = vadd.f32 %v373, %v442
    %v444 = vpop.f32.mrf.mxu0
    %445 = vdwg.mxu0
    %446 = vset.pattern.permute.xlu0 2
    %447 = vperm.xlu0 %446, %v102
    %v448 = vpop.permute.xlu0 %447
    %vm449 = vcmp.eq.s32.totalorder %v448, %v120
    %v450 = vsel %vm449, 1, 0
    %v451 = vcvt.s32.f32 %v450
    %452 = vmatprep.subr.mxu0 0.0
    %453 = vmatpush1.msra.mxu0 %v118
    %454 = vmatprep.subr.mxu0 0.0
    %455 = vmatpush1.msra.mxu0 %v117
    %456 = vmatprep.subr.mxu0 0.0
    %457 = vmatpush1.msra.mxu0 %v116
    %458 = vmatprep.subr.mxu0 0.0
    %459 = vmatpush1.msra.mxu0 %v115
    %460 = vmatprep.subr.mxu0 0.0
    %461 = vmatpush1.msra.mxu0 %v114
    %462 = vmatprep.subr.mxu0 0.0
    %463 = vmatpush1.msra.mxu0 %v113
    %464 = vmatprep.subr.mxu0 0.0
    %465 = vmatpush1.msra.mxu0 %v112
    %466 = vmatprep.subr.mxu0 0.0
    %467 = vmatpush1.msra.mxu0 %v111
    %468 = vmatprep.subr.mxu0 0.0
    %469 = vmatpush1.msra.mxu0 %v110
    %470 = vmatprep.subr.mxu0 0.0
    %471 = vmatpush1.msra.mxu0 %v109
    %472 = vmatprep.subr.mxu0 0.0
    %473 = vmatpush1.msra.mxu0 %v108
    %474 = vmatprep.subr.mxu0 0.0
    %475 = vmatpush1.msra.mxu0 %v107
    %476 = vmatprep.subr.mxu0 0.0
    %477 = vmatpush1.msra.mxu0 %v106
    %478 = vmatprep.subr.mxu0 0.0
    %479 = vmatpush1.msra.mxu0 %v105
    %480 = vmatprep.subr.mxu0 0.0
    %481 = vmatpush1.msra.mxu0 %v104
    %482 = vmatprep.subr.mxu0 0.0
    %483 = vmatpush1.msra.mxu0 %v103
    %484 = vmatprep.subr.mxu0 0.0
    %485 = vmatpush2.msra.mxu0 0.0
    %486 = vmatprep.subr.mxu0 0.0
    %487 = vmatpush2.msra.mxu0 0.0
    %488 = vmatprep.subr.mxu0 0.0
    %489 = vmatpush2.msra.mxu0 0.0
    %490 = vmatprep.subr.mxu0 0.0
    %491 = vmatpush2.msra.mxu0 0.0
    %492 = vmatprep.subr.mxu0 0.0
    %493 = vmatpush2.msra.mxu0 0.0
    %494 = vmatprep.subr.mxu0 0.0
    %495 = vmatpush2.msra.mxu0 0.0
    %496 = vmatprep.subr.mxu0 0.0
    %497 = vmatpush2.msra.mxu0 0.0
    %498 = vmatprep.subr.mxu0 0.0
    %499 = vmatpush2.msra.mxu0 0.0
    %500 = vmatprep.subr.mxu0 0.0
    %501 = vmatpush2.msra.mxu0 0.0
    %502 = vmatprep.subr.mxu0 0.0
    %503 = vmatpush2.msra.mxu0 0.0
    %504 = vmatprep.subr.mxu0 0.0
    %505 = vmatpush2.msra.mxu0 0.0
    %506 = vmatprep.subr.mxu0 0.0
    %507 = vmatpush2.msra.mxu0 0.0
    %508 = vmatprep.subr.mxu0 0.0
    %509 = vmatpush2.msra.mxu0 0.0
    %510 = vmatprep.subr.mxu0 0.0
    %511 = vmatpush2.msra.mxu0 0.0
    %512 = vmatprep.subr.mxu0 0.0
    %513 = vmatpush2.msra.mxu0 0.0
    %514 = vmatprep.subr.mxu0 0.0
    %515 = vmatpush2.msra.mxu0 0.0
    %516 = vmatprep.mubr.f32.mxu0 0.0
    %517 = vmatmul.mubr.f32.gmra.mxu0 %v451
    %v518 = vpop.f32.mrf.mxu0
    %v519 = vadd.f32 0.0, %v518
    %v520 = vpop.f32.mrf.mxu0
    %521 = vdwg.mxu0
    %s522 = scalar_lea.vmem [#allocation7], 256
    %v523 = vld [vmem:[%s522] sm:$0xff]
    %v524 = vld [vmem:[%s522 + $0x8] sm:$0xff]
    %v525 = vld [vmem:[%s522 + $0x10] sm:$0xff]
    %v526 = vld [vmem:[%s522 + $0x18] sm:$0xff]
    %v527 = vld [vmem:[%s522 + $0x20] sm:$0xff]
    %v528 = vld [vmem:[%s522 + $0x28] sm:$0xff]
    %v529 = vld [vmem:[%s522 + $0x30] sm:$0xff]
    %v530 = vld [vmem:[%s522 + $0x38] sm:$0xff]
    %v531 = vld [vmem:[%s522 + $0x40] sm:$0xff]
    %v532 = vld [vmem:[%s522 + $0x48] sm:$0xff]
    %v533 = vld [vmem:[%s522 + $0x50] sm:$0xff]
    %v534 = vld [vmem:[%s522 + $0x58] sm:$0xff]
    %v535 = vld [vmem:[%s522 + $0x60] sm:$0xff]
    %v536 = vld [vmem:[%s522 + $0x68] sm:$0xff]
    %v537 = vld [vmem:[%s522 + $0x70] sm:$0xff]
    %v538 = vld [vmem:[%s522 + $0x78] sm:$0xff]
    %539 = vmatprep.subr.mxu0 0.0
    %540 = vmatpush1.msra.mxu0 %v538
    %541 = vmatprep.subr.mxu0 0.0
    %542 = vmatpush1.msra.mxu0 %v537
    %543 = vmatprep.subr.mxu0 0.0
    %544 = vmatpush1.msra.mxu0 %v536
    %545 = vmatprep.subr.mxu0 0.0
    %546 = vmatpush1.msra.mxu0 %v535
    %547 = vmatprep.subr.mxu0 0.0
    %548 = vmatpush1.msra.mxu0 %v534
    %549 = vmatprep.subr.mxu0 0.0
    %550 = vmatpush1.msra.mxu0 %v533
    %551 = vmatprep.subr.mxu0 0.0
    %552 = vmatpush1.msra.mxu0 %v532
    %553 = vmatprep.subr.mxu0 0.0
    %554 = vmatpush1.msra.mxu0 %v531
    %555 = vmatprep.subr.mxu0 0.0
    %556 = vmatpush1.msra.mxu0 %v530
    %557 = vmatprep.subr.mxu0 0.0
    %558 = vmatpush1.msra.mxu0 %v529
    %559 = vmatprep.subr.mxu0 0.0
    %560 = vmatpush1.msra.mxu0 %v528
    %561 = vmatprep.subr.mxu0 0.0
    %562 = vmatpush1.msra.mxu0 %v527
    %563 = vmatprep.subr.mxu0 0.0
    %564 = vmatpush1.msra.mxu0 %v526
    %565 = vmatprep.subr.mxu0 0.0
    %566 = vmatpush1.msra.mxu0 %v525
    %567 = vmatprep.subr.mxu0 0.0
    %568 = vmatpush1.msra.mxu0 %v524
    %569 = vmatprep.subr.mxu0 0.0
    %570 = vmatpush1.msra.mxu0 %v523
    %571 = vmatprep.subr.mxu0 0.0
    %572 = vmatpush2.msra.mxu0 0.0
    %573 = vmatprep.subr.mxu0 0.0
    %574 = vmatpush2.msra.mxu0 0.0
    %575 = vmatprep.subr.mxu0 0.0
    %576 = vmatpush2.msra.mxu0 0.0
    %577 = vmatprep.subr.mxu0 0.0
    %578 = vmatpush2.msra.mxu0 0.0
    %579 = vmatprep.subr.mxu0 0.0
    %580 = vmatpush2.msra.mxu0 0.0
    %581 = vmatprep.subr.mxu0 0.0
    %582 = vmatpush2.msra.mxu0 0.0
    %583 = vmatprep.subr.mxu0 0.0
    %584 = vmatpush2.msra.mxu0 0.0
    %585 = vmatprep.subr.mxu0 0.0
    %586 = vmatpush2.msra.mxu0 0.0
    %587 = vmatprep.subr.mxu0 0.0
    %588 = vmatpush2.msra.mxu0 0.0
    %589 = vmatprep.subr.mxu0 0.0
    %590 = vmatpush2.msra.mxu0 0.0
    %591 = vmatprep.subr.mxu0 0.0
    %592 = vmatpush2.msra.mxu0 0.0
    %593 = vmatprep.subr.mxu0 0.0
    %594 = vmatpush2.msra.mxu0 0.0
    %595 = vmatprep.subr.mxu0 0.0
    %596 = vmatpush2.msra.mxu0 0.0
    %597 = vmatprep.subr.mxu0 0.0
    %598 = vmatpush2.msra.mxu0 0.0
    %599 = vmatprep.subr.mxu0 0.0
    %600 = vmatpush2.msra.mxu0 0.0
    %601 = vmatprep.subr.mxu0 0.0
    %602 = vmatpush2.msra.mxu0 0.0
    %603 = vmatprep.mubr.f32.mxu0 0.0
    %604 = vmatmul.mubr.f32.gmra.mxu0 %v519
    %v605 = vpop.f32.mrf.mxu0
    %v606 = vadd.f32 0.0, %v605
    %v607 = vpop.f32.mrf.mxu0
    %608 = vdwg.mxu0
    %v609 = vadd.f32 %v443, %v606
    %610 = vset.pattern.permute.xlu0 3
    %611 = vperm.xlu0 %610, %v102
    %v612 = vpop.permute.xlu0 %611
    %vm613 = vcmp.eq.s32.totalorder %v612, %v120
    %v614 = vsel %vm613, 1, 0
    %v615 = vcvt.s32.f32 %v614
    %616 = vmatprep.subr.mxu0 0.0
    %617 = vmatpush1.msra.mxu0 %v118
    %618 = vmatprep.subr.mxu0 0.0
    %619 = vmatpush1.msra.mxu0 %v117
    %620 = vmatprep.subr.mxu0 0.0
    %621 = vmatpush1.msra.mxu0 %v116
    %622 = vmatprep.subr.mxu0 0.0
    %623 = vmatpush1.msra.mxu0 %v115
    %624 = vmatprep.subr.mxu0 0.0
    %625 = vmatpush1.msra.mxu0 %v114
    %626 = vmatprep.subr.mxu0 0.0
    %627 = vmatpush1.msra.mxu0 %v113
    %628 = vmatprep.subr.mxu0 0.0
    %629 = vmatpush1.msra.mxu0 %v112
    %630 = vmatprep.subr.mxu0 0.0
    %631 = vmatpush1.msra.mxu0 %v111
    %632 = vmatprep.subr.mxu0 0.0
    %633 = vmatpush1.msra.mxu0 %v110
    %634 = vmatprep.subr.mxu0 0.0
    %635 = vmatpush1.msra.mxu0 %v109
    %636 = vmatprep.subr.mxu0 0.0
    %637 = vmatpush1.msra.mxu0 %v108
    %638 = vmatprep.subr.mxu0 0.0
    %639 = vmatpush1.msra.mxu0 %v107
    %640 = vmatprep.subr.mxu0 0.0
    %641 = vmatpush1.msra.mxu0 %v106
    %642 = vmatprep.subr.mxu0 0.0
    %643 = vmatpush1.msra.mxu0 %v105
    %644 = vmatprep.subr.mxu0 0.0
    %645 = vmatpush1.msra.mxu0 %v104
    %646 = vmatprep.subr.mxu0 0.0
    %647 = vmatpush1.msra.mxu0 %v103
    %648 = vmatprep.subr.mxu0 0.0
    %649 = vmatpush2.msra.mxu0 0.0
    %650 = vmatprep.subr.mxu0 0.0
    %651 = vmatpush2.msra.mxu0 0.0
    %652 = vmatprep.subr.mxu0 0.0
    %653 = vmatpush2.msra.mxu0 0.0
    %654 = vmatprep.subr.mxu0 0.0
    %655 = vmatpush2.msra.mxu0 0.0
    %656 = vmatprep.subr.mxu0 0.0
    %657 = vmatpush2.msra.mxu0 0.0
    %658 = vmatprep.subr.mxu0 0.0
    %659 = vmatpush2.msra.mxu0 0.0
    %660 = vmatprep.subr.mxu0 0.0
    %661 = vmatpush2.msra.mxu0 0.0
    %662 = vmatprep.subr.mxu0 0.0
    %663 = vmatpush2.msra.mxu0 0.0
    %664 = vmatprep.subr.mxu0 0.0
    %665 = vmatpush2.msra.mxu0 0.0
    %666 = vmatprep.subr.mxu0 0.0
    %667 = vmatpush2.msra.mxu0 0.0
    %668 = vmatprep.subr.mxu0 0.0
    %669 = vmatpush2.msra.mxu0 0.0
    %670 = vmatprep.subr.mxu0 0.0
    %671 = vmatpush2.msra.mxu0 0.0
    %672 = vmatprep.subr.mxu0 0.0
    %673 = vmatpush2.msra.mxu0 0.0
    %674 = vmatprep.subr.mxu0 0.0
    %675 = vmatpush2.msra.mxu0 0.0
    %676 = vmatprep.subr.mxu0 0.0
    %677 = vmatpush2.msra.mxu0 0.0
    %678 = vmatprep.subr.mxu0 0.0
    %679 = vmatpush2.msra.mxu0 0.0
    %680 = vmatprep.mubr.f32.mxu0 0.0
    %681 = vmatmul.mubr.f32.gmra.mxu0 %v615
    %v682 = vpop.f32.mrf.mxu0
    %v683 = vadd.f32 0.0, %v682
    %v684 = vpop.f32.mrf.mxu0
    %685 = vdwg.mxu0
    %s686 = scalar_lea.vmem [#allocation7], 384
    %v687 = vld [vmem:[%s686] sm:$0xff]
    %v688 = vld [vmem:[%s686 + $0x8] sm:$0xff]
    %v689 = vld [vmem:[%s686 + $0x10] sm:$0xff]
    %v690 = vld [vmem:[%s686 + $0x18] sm:$0xff]
    %v691 = vld [vmem:[%s686 + $0x20] sm:$0xff]
    %v692 = vld [vmem:[%s686 + $0x28] sm:$0xff]
    %v693 = vld [vmem:[%s686 + $0x30] sm:$0xff]
    %v694 = vld [vmem:[%s686 + $0x38] sm:$0xff]
    %v695 = vld [vmem:[%s686 + $0x40] sm:$0xff]
    %v696 = vld [vmem:[%s686 + $0x48] sm:$0xff]
    %v697 = vld [vmem:[%s686 + $0x50] sm:$0xff]
    %v698 = vld [vmem:[%s686 + $0x58] sm:$0xff]
    %v699 = vld [vmem:[%s686 + $0x60] sm:$0xff]
    %v700 = vld [vmem:[%s686 + $0x68] sm:$0xff]
    %v701 = vld [vmem:[%s686 + $0x70] sm:$0xff]
    %v702 = vld [vmem:[%s686 + $0x78] sm:$0xff]
    %703 = vmatprep.subr.mxu0 0.0
    %704 = vmatpush1.msra.mxu0 %v702
    %705 = vmatprep.subr.mxu0 0.0
    %706 = vmatpush1.msra.mxu0 %v701
    %707 = vmatprep.subr.mxu0 0.0
    %708 = vmatpush1.msra.mxu0 %v700
    %709 = vmatprep.subr.mxu0 0.0
    %710 = vmatpush1.msra.mxu0 %v699
    %711 = vmatprep.subr.mxu0 0.0
    %712 = vmatpush1.msra.mxu0 %v698
    %713 = vmatprep.subr.mxu0 0.0
    %714 = vmatpush1.msra.mxu0 %v697
    %715 = vmatprep.subr.mxu0 0.0
    %716 = vmatpush1.msra.mxu0 %v696
    %717 = vmatprep.subr.mxu0 0.0
    %718 = vmatpush1.msra.mxu0 %v695
    %719 = vmatprep.subr.mxu0 0.0
    %720 = vmatpush1.msra.mxu0 %v694
    %721 = vmatprep.subr.mxu0 0.0
    %722 = vmatpush1.msra.mxu0 %v693
    %723 = vmatprep.subr.mxu0 0.0
    %724 = vmatpush1.msra.mxu0 %v692
    %725 = vmatprep.subr.mxu0 0.0
    %726 = vmatpush1.msra.mxu0 %v691
    %727 = vmatprep.subr.mxu0 0.0
    %728 = vmatpush1.msra.mxu0 %v690
    %729 = vmatprep.subr.mxu0 0.0
    %730 = vmatpush1.msra.mxu0 %v689
    %731 = vmatprep.subr.mxu0 0.0
    %732 = vmatpush1.msra.mxu0 %v688
    %733 = vmatprep.subr.mxu0 0.0
    %734 = vmatpush1.msra.mxu0 %v687
    %735 = vmatprep.subr.mxu0 0.0
    %736 = vmatpush2.msra.mxu0 0.0
    %737 = vmatprep.subr.mxu0 0.0
    %738 = vmatpush2.msra.mxu0 0.0
    %739 = vmatprep.subr.mxu0 0.0
    %740 = vmatpush2.msra.mxu0 0.0
    %741 = vmatprep.subr.mxu0 0.0
    %742 = vmatpush2.msra.mxu0 0.0
    %743 = vmatprep.subr.mxu0 0.0
    %744 = vmatpush2.msra.mxu0 0.0
    %745 = vmatprep.subr.mxu0 0.0
    %746 = vmatpush2.msra.mxu0 0.0
    %747 = vmatprep.subr.mxu0 0.0
    %748 = vmatpush2.msra.mxu0 0.0
    %749 = vmatprep.subr.mxu0 0.0
    %750 = vmatpush2.msra.mxu0 0.0
    %751 = vmatprep.subr.mxu0 0.0
    %752 = vmatpush2.msra.mxu0 0.0
    %753 = vmatprep.subr.mxu0 0.0
    %754 = vmatpush2.msra.mxu0 0.0
    %755 = vmatprep.subr.mxu0 0.0
    %756 = vmatpush2.msra.mxu0 0.0
    %757 = vmatprep.subr.mxu0 0.0
    %758 = vmatpush2.msra.mxu0 0.0
    %759 = vmatprep.subr.mxu0 0.0
    %760 = vmatpush2.msra.mxu0 0.0
    %761 = vmatprep.subr.mxu0 0.0
    %762 = vmatpush2.msra.mxu0 0.0
    %763 = vmatprep.subr.mxu0 0.0
    %764 = vmatpush2.msra.mxu0 0.0
    %765 = vmatprep.subr.mxu0 0.0
    %766 = vmatpush2.msra.mxu0 0.0
    %767 = vmatprep.mubr.f32.mxu0 0.0
    %768 = vmatmul.mubr.f32.gmra.mxu0 %v683
    %v769 = vpop.f32.mrf.mxu0
    %v770 = vadd.f32 0.0, %v769
    %v771 = vpop.f32.mrf.mxu0
    %772 = vdwg.mxu0
    %v773 = vadd.f32 %v609, %v770
    %774 = vset.pattern.permute.xlu0 4
    %775 = vperm.xlu0 %774, %v102
    %v776 = vpop.permute.xlu0 %775
    %vm777 = vcmp.eq.s32.totalorder %v776, %v120
    %v778 = vsel %vm777, 1, 0
    %v779 = vcvt.s32.f32 %v778
    %780 = vmatprep.subr.mxu0 0.0
    %781 = vmatpush1.msra.mxu0 %v118
    %782 = vmatprep.subr.mxu0 0.0
    %783 = vmatpush1.msra.mxu0 %v117
    %784 = vmatprep.subr.mxu0 0.0
    %785 = vmatpush1.msra.mxu0 %v116
    %786 = vmatprep.subr.mxu0 0.0
    %787 = vmatpush1.msra.mxu0 %v115
    %788 = vmatprep.subr.mxu0 0.0
    %789 = vmatpush1.msra.mxu0 %v114
    %790 = vmatprep.subr.mxu0 0.0
    %791 = vmatpush1.msra.mxu0 %v113
    %792 = vmatprep.subr.mxu0 0.0
    %793 = vmatpush1.msra.mxu0 %v112
    %794 = vmatprep.subr.mxu0 0.0
    %795 = vmatpush1.msra.mxu0 %v111
    %796 = vmatprep.subr.mxu0 0.0
    %797 = vmatpush1.msra.mxu0 %v110
    %798 = vmatprep.subr.mxu0 0.0
    %799 = vmatpush1.msra.mxu0 %v109
    %800 = vmatprep.subr.mxu0 0.0
    %801 = vmatpush1.msra.mxu0 %v108
    %802 = vmatprep.subr.mxu0 0.0
    %803 = vmatpush1.msra.mxu0 %v107
    %804 = vmatprep.subr.mxu0 0.0
    %805 = vmatpush1.msra.mxu0 %v106
    %806 = vmatprep.subr.mxu0 0.0
    %807 = vmatpush1.msra.mxu0 %v105
    %808 = vmatprep.subr.mxu0 0.0
    %809 = vmatpush1.msra.mxu0 %v104
    %810 = vmatprep.subr.mxu0 0.0
    %811 = vmatpush1.msra.mxu0 %v103
    %812 = vmatprep.subr.mxu0 0.0
    %813 = vmatpush2.msra.mxu0 0.0
    %814 = vmatprep.subr.mxu0 0.0
    %815 = vmatpush2.msra.mxu0 0.0
    %816 = vmatprep.subr.mxu0 0.0
    %817 = vmatpush2.msra.mxu0 0.0
    %818 = vmatprep.subr.mxu0 0.0
    %819 = vmatpush2.msra.mxu0 0.0
    %820 = vmatprep.subr.mxu0 0.0
    %821 = vmatpush2.msra.mxu0 0.0
    %822 = vmatprep.subr.mxu0 0.0
    %823 = vmatpush2.msra.mxu0 0.0
    %824 = vmatprep.subr.mxu0 0.0
    %825 = vmatpush2.msra.mxu0 0.0
    %826 = vmatprep.subr.mxu0 0.0
    %827 = vmatpush2.msra.mxu0 0.0
    %828 = vmatprep.subr.mxu0 0.0
    %829 = vmatpush2.msra.mxu0 0.0
    %830 = vmatprep.subr.mxu0 0.0
    %831 = vmatpush2.msra.mxu0 0.0
    %832 = vmatprep.subr.mxu0 0.0
    %833 = vmatpush2.msra.mxu0 0.0
    %834 = vmatprep.subr.mxu0 0.0
    %835 = vmatpush2.msra.mxu0 0.0
    %836 = vmatprep.subr.mxu0 0.0
    %837 = vmatpush2.msra.mxu0 0.0
    %838 = vmatprep.subr.mxu0 0.0
    %839 = vmatpush2.msra.mxu0 0.0
    %840 = vmatprep.subr.mxu0 0.0
    %841 = vmatpush2.msra.mxu0 0.0
    %842 = vmatprep.subr.mxu0 0.0
    %843 = vmatpush2.msra.mxu0 0.0
    %844 = vmatprep.mubr.f32.mxu0 0.0
    %845 = vmatmul.mubr.f32.gmra.mxu0 %v779
    %v846 = vpop.f32.mrf.mxu0
    %v847 = vadd.f32 0.0, %v846
    %v848 = vpop.f32.mrf.mxu0
    %849 = vdwg.mxu0
    %s850 = scalar_lea.vmem [#allocation7], 512
    %v851 = vld [vmem:[%s850] sm:$0xff]
    %v852 = vld [vmem:[%s850 + $0x8] sm:$0xff]
    %v853 = vld [vmem:[%s850 + $0x10] sm:$0xff]
    %v854 = vld [vmem:[%s850 + $0x18] sm:$0xff]
    %v855 = vld [vmem:[%s850 + $0x20] sm:$0xff]
    %v856 = vld [vmem:[%s850 + $0x28] sm:$0xff]
    %v857 = vld [vmem:[%s850 + $0x30] sm:$0xff]
    %v858 = vld [vmem:[%s850 + $0x38] sm:$0xff]
    %v859 = vld [vmem:[%s850 + $0x40] sm:$0xff]
    %v860 = vld [vmem:[%s850 + $0x48] sm:$0xff]
    %v861 = vld [vmem:[%s850 + $0x50] sm:$0xff]
    %v862 = vld [vmem:[%s850 + $0x58] sm:$0xff]
    %v863 = vld [vmem:[%s850 + $0x60] sm:$0xff]
    %v864 = vld [vmem:[%s850 + $0x68] sm:$0xff]
    %v865 = vld [vmem:[%s850 + $0x70] sm:$0xff]
    %v866 = vld [vmem:[%s850 + $0x78] sm:$0xff]
    %867 = vmatprep.subr.mxu0 0.0
    %868 = vmatpush1.msra.mxu0 %v866
    %869 = vmatprep.subr.mxu0 0.0
    %870 = vmatpush1.msra.mxu0 %v865
    %871 = vmatprep.subr.mxu0 0.0
    %872 = vmatpush1.msra.mxu0 %v864
    %873 = vmatprep.subr.mxu0 0.0
    %874 = vmatpush1.msra.mxu0 %v863
    %875 = vmatprep.subr.mxu0 0.0
    %876 = vmatpush1.msra.mxu0 %v862
    %877 = vmatprep.subr.mxu0 0.0
    %878 = vmatpush1.msra.mxu0 %v861
    %879 = vmatprep.subr.mxu0 0.0
    %880 = vmatpush1.msra.mxu0 %v860
    %881 = vmatprep.subr.mxu0 0.0
    %882 = vmatpush1.msra.mxu0 %v859
    %883 = vmatprep.subr.mxu0 0.0
    %884 = vmatpush1.msra.mxu0 %v858
    %885 = vmatprep.subr.mxu0 0.0
    %886 = vmatpush1.msra.mxu0 %v857
    %887 = vmatprep.subr.mxu0 0.0
    %888 = vmatpush1.msra.mxu0 %v856
    %889 = vmatprep.subr.mxu0 0.0
    %890 = vmatpush1.msra.mxu0 %v855
    %891 = vmatprep.subr.mxu0 0.0
    %892 = vmatpush1.msra.mxu0 %v854
    %893 = vmatprep.subr.mxu0 0.0
    %894 = vmatpush1.msra.mxu0 %v853
    %895 = vmatprep.subr.mxu0 0.0
    %896 = vmatpush1.msra.mxu0 %v852
    %897 = vmatprep.subr.mxu0 0.0
    %898 = vmatpush1.msra.mxu0 %v851
    %899 = vmatprep.subr.mxu0 0.0
    %900 = vmatpush2.msra.mxu0 0.0
    %901 = vmatprep.subr.mxu0 0.0
    %902 = vmatpush2.msra.mxu0 0.0
    %903 = vmatprep.subr.mxu0 0.0
    %904 = vmatpush2.msra.mxu0 0.0
    %905 = vmatprep.subr.mxu0 0.0
    %906 = vmatpush2.msra.mxu0 0.0
    %907 = vmatprep.subr.mxu0 0.0
    %908 = vmatpush2.msra.mxu0 0.0
    %909 = vmatprep.subr.mxu0 0.0
    %910 = vmatpush2.msra.mxu0 0.0
    %911 = vmatprep.subr.mxu0 0.0
    %912 = vmatpush2.msra.mxu0 0.0
    %913 = vmatprep.subr.mxu0 0.0
    %914 = vmatpush2.msra.mxu0 0.0
    %915 = vmatprep.subr.mxu0 0.0
    %916 = vmatpush2.msra.mxu0 0.0
    %917 = vmatprep.subr.mxu0 0.0
    %918 = vmatpush2.msra.mxu0 0.0
    %919 = vmatprep.subr.mxu0 0.0
    %920 = vmatpush2.msra.mxu0 0.0
    %921 = vmatprep.subr.mxu0 0.0
    %922 = vmatpush2.msra.mxu0 0.0
    %923 = vmatprep.subr.mxu0 0.0
    %924 = vmatpush2.msra.mxu0 0.0
    %925 = vmatprep.subr.mxu0 0.0
    %926 = vmatpush2.msra.mxu0 0.0
    %927 = vmatprep.subr.mxu0 0.0
    %928 = vmatpush2.msra.mxu0 0.0
    %929 = vmatprep.subr.mxu0 0.0
    %930 = vmatpush2.msra.mxu0 0.0
    %931 = vmatprep.mubr.f32.mxu0 0.0
    %932 = vmatmul.mubr.f32.gmra.mxu0 %v847
    %v933 = vpop.f32.mrf.mxu0
    %v934 = vadd.f32 0.0, %v933
    %v935 = vpop.f32.mrf.mxu0
    %936 = vdwg.mxu0
    %v937 = vadd.f32 %v773, %v934
    %938 = vset.pattern.permute.xlu0 5
    %939 = vperm.xlu0 %938, %v102
    %v940 = vpop.permute.xlu0 %939
    %vm941 = vcmp.eq.s32.totalorder %v940, %v120
    %v942 = vsel %vm941, 1, 0
    %v943 = vcvt.s32.f32 %v942
    %944 = vmatprep.subr.mxu0 0.0
    %945 = vmatpush1.msra.mxu0 %v118
    %946 = vmatprep.subr.mxu0 0.0
    %947 = vmatpush1.msra.mxu0 %v117
    %948 = vmatprep.subr.mxu0 0.0
    %949 = vmatpush1.msra.mxu0 %v116
    %950 = vmatprep.subr.mxu0 0.0
    %951 = vmatpush1.msra.mxu0 %v115
    %952 = vmatprep.subr.mxu0 0.0
    %953 = vmatpush1.msra.mxu0 %v114
    %954 = vmatprep.subr.mxu0 0.0
    %955 = vmatpush1.msra.mxu0 %v113
    %956 = vmatprep.subr.mxu0 0.0
    %957 = vmatpush1.msra.mxu0 %v112
    %958 = vmatprep.subr.mxu0 0.0
    %959 = vmatpush1.msra.mxu0 %v111
    %960 = vmatprep.subr.mxu0 0.0
    %961 = vmatpush1.msra.mxu0 %v110
    %962 = vmatprep.subr.mxu0 0.0
    %963 = vmatpush1.msra.mxu0 %v109
    %964 = vmatprep.subr.mxu0 0.0
    %965 = vmatpush1.msra.mxu0 %v108
    %966 = vmatprep.subr.mxu0 0.0
    %967 = vmatpush1.msra.mxu0 %v107
    %968 = vmatprep.subr.mxu0 0.0
    %969 = vmatpush1.msra.mxu0 %v106
    %970 = vmatprep.subr.mxu0 0.0
    %971 = vmatpush1.msra.mxu0 %v105
    %972 = vmatprep.subr.mxu0 0.0
    %973 = vmatpush1.msra.mxu0 %v104
    %974 = vmatprep.subr.mxu0 0.0
    %975 = vmatpush1.msra.mxu0 %v103
    %976 = vmatprep.subr.mxu0 0.0
    %977 = vmatpush2.msra.mxu0 0.0
    %978 = vmatprep.subr.mxu0 0.0
    %979 = vmatpush2.msra.mxu0 0.0
    %980 = vmatprep.subr.mxu0 0.0
    %981 = vmatpush2.msra.mxu0 0.0
    %982 = vmatprep.subr.mxu0 0.0
    %983 = vmatpush2.msra.mxu0 0.0
    %984 = vmatprep.subr.mxu0 0.0
    %985 = vmatpush2.msra.mxu0 0.0
    %986 = vmatprep.subr.mxu0 0.0
    %987 = vmatpush2.msra.mxu0 0.0
    %988 = vmatprep.subr.mxu0 0.0
    %989 = vmatpush2.msra.mxu0 0.0
    %990 = vmatprep.subr.mxu0 0.0
    %991 = vmatpush2.msra.mxu0 0.0
    %992 = vmatprep.subr.mxu0 0.0
    %993 = vmatpush2.msra.mxu0 0.0
    %994 = vmatprep.subr.mxu0 0.0
    %995 = vmatpush2.msra.mxu0 0.0
    %996 = vmatprep.subr.mxu0 0.0
    %997 = vmatpush2.msra.mxu0 0.0
    %998 = vmatprep.subr.mxu0 0.0
    %999 = vmatpush2.msra.mxu0 0.0
    %1000 = vmatprep.subr.mxu0 0.0
    %1001 = vmatpush2.msra.mxu0 0.0
    %1002 = vmatprep.subr.mxu0 0.0
    %1003 = vmatpush2.msra.mxu0 0.0
    %1004 = vmatprep.subr.mxu0 0.0
    %1005 = vmatpush2.msra.mxu0 0.0
    %1006 = vmatprep.subr.mxu0 0.0
    %1007 = vmatpush2.msra.mxu0 0.0
    %1008 = vmatprep.mubr.f32.mxu0 0.0
    %1009 = vmatmul.mubr.f32.gmra.mxu0 %v943
    %v1010 = vpop.f32.mrf.mxu0
    %v1011 = vadd.f32 0.0, %v1010
    %v1012 = vpop.f32.mrf.mxu0
    %1013 = vdwg.mxu0
    %s1014 = scalar_lea.vmem [#allocation7], 640
    %v1015 = vld [vmem:[%s1014] sm:$0xff]
    %v1016 = vld [vmem:[%s1014 + $0x8] sm:$0xff]
    %v1017 = vld [vmem:[%s1014 + $0x10] sm:$0xff]
    %v1018 = vld [vmem:[%s1014 + $0x18] sm:$0xff]
    %v1019 = vld [vmem:[%s1014 + $0x20] sm:$0xff]
    %v1020 = vld [vmem:[%s1014 + $0x28] sm:$0xff]
    %v1021 = vld [vmem:[%s1014 + $0x30] sm:$0xff]
    %v1022 = vld [vmem:[%s1014 + $0x38] sm:$0xff]
    %v1023 = vld [vmem:[%s1014 + $0x40] sm:$0xff]
    %v1024 = vld [vmem:[%s1014 + $0x48] sm:$0xff]
    %v1025 = vld [vmem:[%s1014 + $0x50] sm:$0xff]
    %v1026 = vld [vmem:[%s1014 + $0x58] sm:$0xff]
    %v1027 = vld [vmem:[%s1014 + $0x60] sm:$0xff]
    %v1028 = vld [vmem:[%s1014 + $0x68] sm:$0xff]
    %v1029 = vld [vmem:[%s1014 + $0x70] sm:$0xff]
    %v1030 = vld [vmem:[%s1014 + $0x78] sm:$0xff]
    %1031 = vmatprep.subr.mxu0 0.0
    %1032 = vmatpush1.msra.mxu0 %v1030
    %1033 = vmatprep.subr.mxu0 0.0
    %1034 = vmatpush1.msra.mxu0 %v1029
    %1035 = vmatprep.subr.mxu0 0.0
    %1036 = vmatpush1.msra.mxu0 %v1028
    %1037 = vmatprep.subr.mxu0 0.0
    %1038 = vmatpush1.msra.mxu0 %v1027
    %1039 = vmatprep.subr.mxu0 0.0
    %1040 = vmatpush1.msra.mxu0 %v1026
    %1041 = vmatprep.subr.mxu0 0.0
    %1042 = vmatpush1.msra.mxu0 %v1025
    %1043 = vmatprep.subr.mxu0 0.0
    %1044 = vmatpush1.msra.mxu0 %v1024
    %1045 = vmatprep.subr.mxu0 0.0
    %1046 = vmatpush1.msra.mxu0 %v1023
    %1047 = vmatprep.subr.mxu0 0.0
    %1048 = vmatpush1.msra.mxu0 %v1022
    %1049 = vmatprep.subr.mxu0 0.0
    %1050 = vmatpush1.msra.mxu0 %v1021
    %1051 = vmatprep.subr.mxu0 0.0
    %1052 = vmatpush1.msra.mxu0 %v1020
    %1053 = vmatprep.subr.mxu0 0.0
    %1054 = vmatpush1.msra.mxu0 %v1019
    %1055 = vmatprep.subr.mxu0 0.0
    %1056 = vmatpush1.msra.mxu0 %v1018
    %1057 = vmatprep.subr.mxu0 0.0
    %1058 = vmatpush1.msra.mxu0 %v1017
    %1059 = vmatprep.subr.mxu0 0.0
    %1060 = vmatpush1.msra.mxu0 %v1016
    %1061 = vmatprep.subr.mxu0 0.0
    %1062 = vmatpush1.msra.mxu0 %v1015
    %1063 = vmatprep.subr.mxu0 0.0
    %1064 = vmatpush2.msra.mxu0 0.0
    %1065 = vmatprep.subr.mxu0 0.0
    %1066 = vmatpush2.msra.mxu0 0.0
    %1067 = vmatprep.subr.mxu0 0.0
    %1068 = vmatpush2.msra.mxu0 0.0
    %1069 = vmatprep.subr.mxu0 0.0
    %1070 = vmatpush2.msra.mxu0 0.0
    %1071 = vmatprep.subr.mxu0 0.0
    %1072 = vmatpush2.msra.mxu0 0.0
    %1073 = vmatprep.subr.mxu0 0.0
    %1074 = vmatpush2.msra.mxu0 0.0
    %1075 = vmatprep.subr.mxu0 0.0
    %1076 = vmatpush2.msra.mxu0 0.0
    %1077 = vmatprep.subr.mxu0 0.0
    %1078 = vmatpush2.msra.mxu0 0.0
    %1079 = vmatprep.subr.mxu0 0.0
    %1080 = vmatpush2.msra.mxu0 0.0
    %1081 = vmatprep.subr.mxu0 0.0
    %1082 = vmatpush2.msra.mxu0 0.0
    %1083 = vmatprep.subr.mxu0 0.0
    %1084 = vmatpush2.msra.mxu0 0.0
    %1085 = vmatprep.subr.mxu0 0.0
    %1086 = vmatpush2.msra.mxu0 0.0
    %1087 = vmatprep.subr.mxu0 0.0
    %1088 = vmatpush2.msra.mxu0 0.0
    %1089 = vmatprep.subr.mxu0 0.0
    %1090 = vmatpush2.msra.mxu0 0.0
    %1091 = vmatprep.subr.mxu0 0.0
    %1092 = vmatpush2.msra.mxu0 0.0
    %1093 = vmatprep.subr.mxu0 0.0
    %1094 = vmatpush2.msra.mxu0 0.0
    %1095 = vmatprep.mubr.f32.mxu0 0.0
    %1096 = vmatmul.mubr.f32.gmra.mxu0 %v1011
    %v1097 = vpop.f32.mrf.mxu0
    %v1098 = vadd.f32 0.0, %v1097
    %v1099 = vpop.f32.mrf.mxu0
    %1100 = vdwg.mxu0
    %v1101 = vadd.f32 %v937, %v1098
    %1102 = vset.pattern.permute.xlu0 6
    %1103 = vperm.xlu0 %1102, %v102
    %v1104 = vpop.permute.xlu0 %1103
    %vm1105 = vcmp.eq.s32.totalorder %v1104, %v120
    %v1106 = vsel %vm1105, 1, 0
    %v1107 = vcvt.s32.f32 %v1106
    %1108 = vmatprep.subr.mxu0 0.0
    %1109 = vmatpush1.msra.mxu0 %v118
    %1110 = vmatprep.subr.mxu0 0.0
    %1111 = vmatpush1.msra.mxu0 %v117
    %1112 = vmatprep.subr.mxu0 0.0
    %1113 = vmatpush1.msra.mxu0 %v116
    %1114 = vmatprep.subr.mxu0 0.0
    %1115 = vmatpush1.msra.mxu0 %v115
    %1116 = vmatprep.subr.mxu0 0.0
    %1117 = vmatpush1.msra.mxu0 %v114
    %1118 = vmatprep.subr.mxu0 0.0
    %1119 = vmatpush1.msra.mxu0 %v113
    %1120 = vmatprep.subr.mxu0 0.0
    %1121 = vmatpush1.msra.mxu0 %v112
    %1122 = vmatprep.subr.mxu0 0.0
    %1123 = vmatpush1.msra.mxu0 %v111
    %1124 = vmatprep.subr.mxu0 0.0
    %1125 = vmatpush1.msra.mxu0 %v110
    %1126 = vmatprep.subr.mxu0 0.0
    %1127 = vmatpush1.msra.mxu0 %v109
    %1128 = vmatprep.subr.mxu0 0.0
    %1129 = vmatpush1.msra.mxu0 %v108
    %1130 = vmatprep.subr.mxu0 0.0
    %1131 = vmatpush1.msra.mxu0 %v107
    %1132 = vmatprep.subr.mxu0 0.0
    %1133 = vmatpush1.msra.mxu0 %v106
    %1134 = vmatprep.subr.mxu0 0.0
    %1135 = vmatpush1.msra.mxu0 %v105
    %1136 = vmatprep.subr.mxu0 0.0
    %1137 = vmatpush1.msra.mxu0 %v104
    %1138 = vmatprep.subr.mxu0 0.0
    %1139 = vmatpush1.msra.mxu0 %v103
    %1140 = vmatprep.subr.mxu0 0.0
    %1141 = vmatpush2.msra.mxu0 0.0
    %1142 = vmatprep.subr.mxu0 0.0
    %1143 = vmatpush2.msra.mxu0 0.0
    %1144 = vmatprep.subr.mxu0 0.0
    %1145 = vmatpush2.msra.mxu0 0.0
    %1146 = vmatprep.subr.mxu0 0.0
    %1147 = vmatpush2.msra.mxu0 0.0
    %1148 = vmatprep.subr.mxu0 0.0
    %1149 = vmatpush2.msra.mxu0 0.0
    %1150 = vmatprep.subr.mxu0 0.0
    %1151 = vmatpush2.msra.mxu0 0.0
    %1152 = vmatprep.subr.mxu0 0.0
    %1153 = vmatpush2.msra.mxu0 0.0
    %1154 = vmatprep.subr.mxu0 0.0
    %1155 = vmatpush2.msra.mxu0 0.0
    %1156 = vmatprep.subr.mxu0 0.0
    %1157 = vmatpush2.msra.mxu0 0.0
    %1158 = vmatprep.subr.mxu0 0.0
    %1159 = vmatpush2.msra.mxu0 0.0
    %1160 = vmatprep.subr.mxu0 0.0
    %1161 = vmatpush2.msra.mxu0 0.0
    %1162 = vmatprep.subr.mxu0 0.0
    %1163 = vmatpush2.msra.mxu0 0.0
    %1164 = vmatprep.subr.mxu0 0.0
    %1165 = vmatpush2.msra.mxu0 0.0
    %1166 = vmatprep.subr.mxu0 0.0
    %1167 = vmatpush2.msra.mxu0 0.0
    %1168 = vmatprep.subr.mxu0 0.0
    %1169 = vmatpush2.msra.mxu0 0.0
    %1170 = vmatprep.subr.mxu0 0.0
    %1171 = vmatpush2.msra.mxu0 0.0
    %1172 = vmatprep.mubr.f32.mxu0 0.0
    %1173 = vmatmul.mubr.f32.gmra.mxu0 %v1107
    %v1174 = vpop.f32.mrf.mxu0
    %v1175 = vadd.f32 0.0, %v1174
    %v1176 = vpop.f32.mrf.mxu0
    %1177 = vdwg.mxu0
    %s1178 = scalar_lea.vmem [#allocation7], 768
    %v1179 = vld [vmem:[%s1178] sm:$0xff]
    %v1180 = vld [vmem:[%s1178 + $0x8] sm:$0xff]
    %v1181 = vld [vmem:[%s1178 + $0x10] sm:$0xff]
    %v1182 = vld [vmem:[%s1178 + $0x18] sm:$0xff]
    %v1183 = vld [vmem:[%s1178 + $0x20] sm:$0xff]
    %v1184 = vld [vmem:[%s1178 + $0x28] sm:$0xff]
    %v1185 = vld [vmem:[%s1178 + $0x30] sm:$0xff]
    %v1186 = vld [vmem:[%s1178 + $0x38] sm:$0xff]
    %v1187 = vld [vmem:[%s1178 + $0x40] sm:$0xff]
    %v1188 = vld [vmem:[%s1178 + $0x48] sm:$0xff]
    %v1189 = vld [vmem:[%s1178 + $0x50] sm:$0xff]
    %v1190 = vld [vmem:[%s1178 + $0x58] sm:$0xff]
    %v1191 = vld [vmem:[%s1178 + $0x60] sm:$0xff]
    %v1192 = vld [vmem:[%s1178 + $0x68] sm:$0xff]
    %v1193 = vld [vmem:[%s1178 + $0x70] sm:$0xff]
    %v1194 = vld [vmem:[%s1178 + $0x78] sm:$0xff]
    %1195 = vmatprep.subr.mxu0 0.0
    %1196 = vmatpush1.msra.mxu0 %v1194
    %1197 = vmatprep.subr.mxu0 0.0
    %1198 = vmatpush1.msra.mxu0 %v1193
    %1199 = vmatprep.subr.mxu0 0.0
    %1200 = vmatpush1.msra.mxu0 %v1192
    %1201 = vmatprep.subr.mxu0 0.0
    %1202 = vmatpush1.msra.mxu0 %v1191
    %1203 = vmatprep.subr.mxu0 0.0
    %1204 = vmatpush1.msra.mxu0 %v1190
    %1205 = vmatprep.subr.mxu0 0.0
    %1206 = vmatpush1.msra.mxu0 %v1189
    %1207 = vmatprep.subr.mxu0 0.0
    %1208 = vmatpush1.msra.mxu0 %v1188
    %1209 = vmatprep.subr.mxu0 0.0
    %1210 = vmatpush1.msra.mxu0 %v1187
    %1211 = vmatprep.subr.mxu0 0.0
    %1212 = vmatpush1.msra.mxu0 %v1186
    %1213 = vmatprep.subr.mxu0 0.0
    %1214 = vmatpush1.msra.mxu0 %v1185
    %1215 = vmatprep.subr.mxu0 0.0
    %1216 = vmatpush1.msra.mxu0 %v1184
    %1217 = vmatprep.subr.mxu0 0.0
    %1218 = vmatpush1.msra.mxu0 %v1183
    %1219 = vmatprep.subr.mxu0 0.0
    %1220 = vmatpush1.msra.mxu0 %v1182
    %1221 = vmatprep.subr.mxu0 0.0
    %1222 = vmatpush1.msra.mxu0 %v1181
    %1223 = vmatprep.subr.mxu0 0.0
    %1224 = vmatpush1.msra.mxu0 %v1180
    %1225 = vmatprep.subr.mxu0 0.0
    %1226 = vmatpush1.msra.mxu0 %v1179
    %1227 = vmatprep.subr.mxu0 0.0
    %1228 = vmatpush2.msra.mxu0 0.0
    %1229 = vmatprep.subr.mxu0 0.0
    %1230 = vmatpush2.msra.mxu0 0.0
    %1231 = vmatprep.subr.mxu0 0.0
    %1232 = vmatpush2.msra.mxu0 0.0
    %1233 = vmatprep.subr.mxu0 0.0
    %1234 = vmatpush2.msra.mxu0 0.0
    %1235 = vmatprep.subr.mxu0 0.0
    %1236 = vmatpush2.msra.mxu0 0.0
    %1237 = vmatprep.subr.mxu0 0.0
    %1238 = vmatpush2.msra.mxu0 0.0
    %1239 = vmatprep.subr.mxu0 0.0
    %1240 = vmatpush2.msra.mxu0 0.0
    %1241 = vmatprep.subr.mxu0 0.0
    %1242 = vmatpush2.msra.mxu0 0.0
    %1243 = vmatprep.subr.mxu0 0.0
    %1244 = vmatpush2.msra.mxu0 0.0
    %1245 = vmatprep.subr.mxu0 0.0
    %1246 = vmatpush2.msra.mxu0 0.0
    %1247 = vmatprep.subr.mxu0 0.0
    %1248 = vmatpush2.msra.mxu0 0.0
    %1249 = vmatprep.subr.mxu0 0.0
    %1250 = vmatpush2.msra.mxu0 0.0
    %1251 = vmatprep.subr.mxu0 0.0
    %1252 = vmatpush2.msra.mxu0 0.0
    %1253 = vmatprep.subr.mxu0 0.0
    %1254 = vmatpush2.msra.mxu0 0.0
    %1255 = vmatprep.subr.mxu0 0.0
    %1256 = vmatpush2.msra.mxu0 0.0
    %1257 = vmatprep.subr.mxu0 0.0
    %1258 = vmatpush2.msra.mxu0 0.0
    %1259 = vmatprep.mubr.f32.mxu0 0.0
    %1260 = vmatmul.mubr.f32.gmra.mxu0 %v1175
    %v1261 = vpop.f32.mrf.mxu0
    %v1262 = vadd.f32 0.0, %v1261
    %v1263 = vpop.f32.mrf.mxu0
    %1264 = vdwg.mxu0
    %v1265 = vadd.f32 %v1101, %v1262
    %1266 = vset.pattern.permute.xlu0 7
    %1267 = vperm.xlu0 %1266, %v102
    %v1268 = vpop.permute.xlu0 %1267
    %vm1269 = vcmp.eq.s32.totalorder %v1268, %v120
    %v1270 = vsel %vm1269, 1, 0
    %v1271 = vcvt.s32.f32 %v1270
    %1272 = vmatprep.subr.mxu0 0.0
    %1273 = vmatpush1.msra.mxu0 %v118
    %1274 = vmatprep.subr.mxu0 0.0
    %1275 = vmatpush1.msra.mxu0 %v117
    %1276 = vmatprep.subr.mxu0 0.0
    %1277 = vmatpush1.msra.mxu0 %v116
    %1278 = vmatprep.subr.mxu0 0.0
    %1279 = vmatpush1.msra.mxu0 %v115
    %1280 = vmatprep.subr.mxu0 0.0
    %1281 = vmatpush1.msra.mxu0 %v114
    %1282 = vmatprep.subr.mxu0 0.0
    %1283 = vmatpush1.msra.mxu0 %v113
    %1284 = vmatprep.subr.mxu0 0.0
    %1285 = vmatpush1.msra.mxu0 %v112
    %1286 = vmatprep.subr.mxu0 0.0
    %1287 = vmatpush1.msra.mxu0 %v111
    %1288 = vmatprep.subr.mxu0 0.0
    %1289 = vmatpush1.msra.mxu0 %v110
    %1290 = vmatprep.subr.mxu0 0.0
    %1291 = vmatpush1.msra.mxu0 %v109
    %1292 = vmatprep.subr.mxu0 0.0
    %1293 = vmatpush1.msra.mxu0 %v108
    %1294 = vmatprep.subr.mxu0 0.0
    %1295 = vmatpush1.msra.mxu0 %v107
    %1296 = vmatprep.subr.mxu0 0.0
    %1297 = vmatpush1.msra.mxu0 %v106
    %1298 = vmatprep.subr.mxu0 0.0
    %1299 = vmatpush1.msra.mxu0 %v105
    %1300 = vmatprep.subr.mxu0 0.0
    %1301 = vmatpush1.msra.mxu0 %v104
    %1302 = vmatprep.subr.mxu0 0.0
    %1303 = vmatpush1.msra.mxu0 %v103
    %1304 = vmatprep.subr.mxu0 0.0
    %1305 = vmatpush2.msra.mxu0 0.0
    %1306 = vmatprep.subr.mxu0 0.0
    %1307 = vmatpush2.msra.mxu0 0.0
    %1308 = vmatprep.subr.mxu0 0.0
    %1309 = vmatpush2.msra.mxu0 0.0
    %1310 = vmatprep.subr.mxu0 0.0
    %1311 = vmatpush2.msra.mxu0 0.0
    %1312 = vmatprep.subr.mxu0 0.0
    %1313 = vmatpush2.msra.mxu0 0.0
    %1314 = vmatprep.subr.mxu0 0.0
    %1315 = vmatpush2.msra.mxu0 0.0
    %1316 = vmatprep.subr.mxu0 0.0
    %1317 = vmatpush2.msra.mxu0 0.0
    %1318 = vmatprep.subr.mxu0 0.0
    %1319 = vmatpush2.msra.mxu0 0.0
    %1320 = vmatprep.subr.mxu0 0.0
    %1321 = vmatpush2.msra.mxu0 0.0
    %1322 = vmatprep.subr.mxu0 0.0
    %1323 = vmatpush2.msra.mxu0 0.0
    %1324 = vmatprep.subr.mxu0 0.0
    %1325 = vmatpush2.msra.mxu0 0.0
    %1326 = vmatprep.subr.mxu0 0.0
    %1327 = vmatpush2.msra.mxu0 0.0
    %1328 = vmatprep.subr.mxu0 0.0
    %1329 = vmatpush2.msra.mxu0 0.0
    %1330 = vmatprep.subr.mxu0 0.0
    %1331 = vmatpush2.msra.mxu0 0.0
    %1332 = vmatprep.subr.mxu0 0.0
    %1333 = vmatpush2.msra.mxu0 0.0
    %1334 = vmatprep.subr.mxu0 0.0
    %1335 = vmatpush2.msra.mxu0 0.0
    %1336 = vmatprep.mubr.f32.mxu0 0.0
    %1337 = vmatmul.mubr.f32.gmra.mxu0 %v1271
    %v1338 = vpop.f32.mrf.mxu0
    %v1339 = vadd.f32 0.0, %v1338
    %v1340 = vpop.f32.mrf.mxu0
    %1341 = vdwg.mxu0
    %s1342 = scalar_lea.vmem [#allocation7], 896
    %v1343 = vld [vmem:[%s1342] sm:$0xff]
    %v1344 = vld [vmem:[%s1342 + $0x8] sm:$0xff]
    %v1345 = vld [vmem:[%s1342 + $0x10] sm:$0xff]
    %v1346 = vld [vmem:[%s1342 + $0x18] sm:$0xff]
    %v1347 = vld [vmem:[%s1342 + $0x20] sm:$0xff]
    %v1348 = vld [vmem:[%s1342 + $0x28] sm:$0xff]
    %v1349 = vld [vmem:[%s1342 + $0x30] sm:$0xff]
    %v1350 = vld [vmem:[%s1342 + $0x38] sm:$0xff]
    %v1351 = vld [vmem:[%s1342 + $0x40] sm:$0xff]
    %v1352 = vld [vmem:[%s1342 + $0x48] sm:$0xff]
    %v1353 = vld [vmem:[%s1342 + $0x50] sm:$0xff]
    %v1354 = vld [vmem:[%s1342 + $0x58] sm:$0xff]
    %v1355 = vld [vmem:[%s1342 + $0x60] sm:$0xff]
    %v1356 = vld [vmem:[%s1342 + $0x68] sm:$0xff]
    %v1357 = vld [vmem:[%s1342 + $0x70] sm:$0xff]
    %v1358 = vld [vmem:[%s1342 + $0x78] sm:$0xff]
    %1359 = vmatprep.subr.mxu0 0.0
    %1360 = vmatpush1.msra.mxu0 %v1358
    %1361 = vmatprep.subr.mxu0 0.0
    %1362 = vmatpush1.msra.mxu0 %v1357
    %1363 = vmatprep.subr.mxu0 0.0
    %1364 = vmatpush1.msra.mxu0 %v1356
    %1365 = vmatprep.subr.mxu0 0.0
    %1366 = vmatpush1.msra.mxu0 %v1355
    %1367 = vmatprep.subr.mxu0 0.0
    %1368 = vmatpush1.msra.mxu0 %v1354
    %1369 = vmatprep.subr.mxu0 0.0
    %1370 = vmatpush1.msra.mxu0 %v1353
    %1371 = vmatprep.subr.mxu0 0.0
    %1372 = vmatpush1.msra.mxu0 %v1352
    %1373 = vmatprep.subr.mxu0 0.0
    %1374 = vmatpush1.msra.mxu0 %v1351
    %1375 = vmatprep.subr.mxu0 0.0
    %1376 = vmatpush1.msra.mxu0 %v1350
    %1377 = vmatprep.subr.mxu0 0.0
    %1378 = vmatpush1.msra.mxu0 %v1349
    %1379 = vmatprep.subr.mxu0 0.0
    %1380 = vmatpush1.msra.mxu0 %v1348
    %1381 = vmatprep.subr.mxu0 0.0
    %1382 = vmatpush1.msra.mxu0 %v1347
    %1383 = vmatprep.subr.mxu0 0.0
    %1384 = vmatpush1.msra.mxu0 %v1346
    %1385 = vmatprep.subr.mxu0 0.0
    %1386 = vmatpush1.msra.mxu0 %v1345
    %1387 = vmatprep.subr.mxu0 0.0
    %1388 = vmatpush1.msra.mxu0 %v1344
    %1389 = vmatprep.subr.mxu0 0.0
    %1390 = vmatpush1.msra.mxu0 %v1343
    %1391 = vmatprep.subr.mxu0 0.0
    %1392 = vmatpush2.msra.mxu0 0.0
    %1393 = vmatprep.subr.mxu0 0.0
    %1394 = vmatpush2.msra.mxu0 0.0
    %1395 = vmatprep.subr.mxu0 0.0
    %1396 = vmatpush2.msra.mxu0 0.0
    %1397 = vmatprep.subr.mxu0 0.0
    %1398 = vmatpush2.msra.mxu0 0.0
    %1399 = vmatprep.subr.mxu0 0.0
    %1400 = vmatpush2.msra.mxu0 0.0
    %1401 = vmatprep.subr.mxu0 0.0
    %1402 = vmatpush2.msra.mxu0 0.0
    %1403 = vmatprep.subr.mxu0 0.0
    %1404 = vmatpush2.msra.mxu0 0.0
    %1405 = vmatprep.subr.mxu0 0.0
    %1406 = vmatpush2.msra.mxu0 0.0
    %1407 = vmatprep.subr.mxu0 0.0
    %1408 = vmatpush2.msra.mxu0 0.0
    %1409 = vmatprep.subr.mxu0 0.0
    %1410 = vmatpush2.msra.mxu0 0.0
    %1411 = vmatprep.subr.mxu0 0.0
    %1412 = vmatpush2.msra.mxu0 0.0
    %1413 = vmatprep.subr.mxu0 0.0
    %1414 = vmatpush2.msra.mxu0 0.0
    %1415 = vmatprep.subr.mxu0 0.0
    %1416 = vmatpush2.msra.mxu0 0.0
    %1417 = vmatprep.subr.mxu0 0.0
    %1418 = vmatpush2.msra.mxu0 0.0
    %1419 = vmatprep.subr.mxu0 0.0
    %1420 = vmatpush2.msra.mxu0 0.0
    %1421 = vmatprep.subr.mxu0 0.0
    %1422 = vmatpush2.msra.mxu0 0.0
    %1423 = vmatprep.mubr.f32.mxu0 0.0
    %1424 = vmatmul.mubr.f32.gmra.mxu0 %v1339
    %v1425 = vpop.f32.mrf.mxu0
    %v1426 = vadd.f32 0.0, %v1425
    %v1427 = vpop.f32.mrf.mxu0
    %1428 = vdwg.mxu0
    %v1429 = vadd.f32 %v1265, %v1426
    %v1430 = vld [vmem:[%s3] sm:$0x1]
    %v1432 = vlaneseq
    %v1433 = vshrl.u32 %v1432, 7
    %v1434 = vsub.s32 0, %v1433
    %v1435 = vrot.slane %v1430, %v1434
    %v1437 = vadd.f32 %v1429, %v1435
    %v1438 = vld [vmem:[#allocation8] sm:$0xff]
    %v1439 = vld [vmem:[#allocation8 + $0x8] sm:$0xff]
    %v1440 = vld [vmem:[#allocation8 + $0x10] sm:$0xff]
    %v1441 = vld [vmem:[#allocation8 + $0x18] sm:$0xff]
    %v1442 = vld [vmem:[#allocation8 + $0x20] sm:$0xff]
    %v1443 = vld [vmem:[#allocation8 + $0x28] sm:$0xff]
    %v1444 = vld [vmem:[#allocation8 + $0x30] sm:$0xff]
    %v1445 = vld [vmem:[#allocation8 + $0x38] sm:$0xff]
    %v1446 = vld [vmem:[#allocation8 + $0x40] sm:$0xff]
    %v1447 = vld [vmem:[#allocation8 + $0x48] sm:$0xff]
    %v1448 = vld [vmem:[#allocation8 + $0x50] sm:$0xff]
    %v1449 = vld [vmem:[#allocation8 + $0x58] sm:$0xff]
    %v1450 = vld [vmem:[#allocation8 + $0x60] sm:$0xff]
    %v1451 = vld [vmem:[#allocation8 + $0x68] sm:$0xff]
    %v1452 = vld [vmem:[#allocation8 + $0x70] sm:$0xff]
    %v1453 = vld [vmem:[#allocation8 + $0x78] sm:$0xff]
    %v1454 = vld [vmem:[%s5] sm:$0x1]
    %v1456 = vlaneseq
    %v1457 = vshrl.u32 %v1456, 7
    %v1458 = vsub.s32 0, %v1457
    %v1459 = vrot.slane %v1454, %v1458
    %1461 = vmatprep.subr.mxu0 0.0
    %1462 = vmatpush1.msra.mxu0 %v1453
    %1463 = vmatprep.subr.mxu0 0.0
    %1464 = vmatpush1.msra.mxu0 %v1452
    %1465 = vmatprep.subr.mxu0 0.0
    %1466 = vmatpush1.msra.mxu0 %v1451
    %1467 = vmatprep.subr.mxu0 0.0
    %1468 = vmatpush1.msra.mxu0 %v1450
    %1469 = vmatprep.subr.mxu0 0.0
    %1470 = vmatpush1.msra.mxu0 %v1449
    %1471 = vmatprep.subr.mxu0 0.0
    %1472 = vmatpush1.msra.mxu0 %v1448
    %1473 = vmatprep.subr.mxu0 0.0
    %1474 = vmatpush1.msra.mxu0 %v1447
    %1475 = vmatprep.subr.mxu0 0.0
    %1476 = vmatpush1.msra.mxu0 %v1446
    %1477 = vmatprep.subr.mxu0 0.0
    %1478 = vmatpush1.msra.mxu0 %v1445
    %1479 = vmatprep.subr.mxu0 0.0
    %1480 = vmatpush1.msra.mxu0 %v1444
    %1481 = vmatprep.subr.mxu0 0.0
    %1482 = vmatpush1.msra.mxu0 %v1443
    %1483 = vmatprep.subr.mxu0 0.0
    %1484 = vmatpush1.msra.mxu0 %v1442
    %1485 = vmatprep.subr.mxu0 0.0
    %1486 = vmatpush1.msra.mxu0 %v1441
    %1487 = vmatprep.subr.mxu0 0.0
    %1488 = vmatpush1.msra.mxu0 %v1440
    %1489 = vmatprep.subr.mxu0 0.0
    %1490 = vmatpush1.msra.mxu0 %v1439
    %1491 = vmatprep.subr.mxu0 0.0
    %1492 = vmatpush1.msra.mxu0 %v1438
    %1493 = vmatprep.subr.mxu0 0.0
    %1494 = vmatpush2.msra.mxu0 0.0
    %1495 = vmatprep.subr.mxu0 0.0
    %1496 = vmatpush2.msra.mxu0 0.0
    %1497 = vmatprep.subr.mxu0 0.0
    %1498 = vmatpush2.msra.mxu0 0.0
    %1499 = vmatprep.subr.mxu0 0.0
    %1500 = vmatpush2.msra.mxu0 0.0
    %1501 = vmatprep.subr.mxu0 0.0
    %1502 = vmatpush2.msra.mxu0 0.0
    %1503 = vmatprep.subr.mxu0 0.0
    %1504 = vmatpush2.msra.mxu0 0.0
    %1505 = vmatprep.subr.mxu0 0.0
    %1506 = vmatpush2.msra.mxu0 0.0
    %1507 = vmatprep.subr.mxu0 0.0
    %1508 = vmatpush2.msra.mxu0 0.0
    %1509 = vmatprep.subr.mxu0 0.0
    %1510 = vmatpush2.msra.mxu0 0.0
    %1511 = vmatprep.subr.mxu0 0.0
    %1512 = vmatpush2.msra.mxu0 0.0
    %1513 = vmatprep.subr.mxu0 0.0
    %1514 = vmatpush2.msra.mxu0 0.0
    %1515 = vmatprep.subr.mxu0 0.0
    %1516 = vmatpush2.msra.mxu0 0.0
    %1517 = vmatprep.subr.mxu0 0.0
    %1518 = vmatpush2.msra.mxu0 0.0
    %1519 = vmatprep.subr.mxu0 0.0
    %1520 = vmatpush2.msra.mxu0 0.0
    %1521 = vmatprep.subr.mxu0 0.0
    %1522 = vmatpush2.msra.mxu0 0.0
    %1523 = vmatprep.subr.mxu0 0.0
    %1524 = vmatpush2.msra.mxu0 0.0
    %1525 = vmatprep.mubr.f32.mxu0 0.0
    %1526 = vmatmul.mubr.f32.gmra.mxu0 %v1437
    %v1527 = vpop.f32.mrf.mxu0
    %v1528 = vadd.f32 %v1459, %v1527
    %v1529 = vpop.f32.mrf.mxu0
    %1530 = vdwg.mxu0
    %vm1531 = vcmask 1043456
    %v1532 = vsel %vm1531, %v1528, 0.0
    %v1533 = vrot.slane %v1532, 4
    %v1534 = vadd.f32 %v1532, %v1533
    %v1535 = vrot.slane %v1534, 2
    %v1536 = vadd.f32 %v1534, %v1535
    %v1537 = vrot.slane %v1536, 1
    %v1538 = vadd.f32 %v1536, %v1537
    %v1539 = vrcp.pop 4.0
    %v1540 = vmul.f32 %v1538, %v1539
    %v1541 = vsub.f32 %v1528, %v1540
    %v1542 = vmul.f32 %v1541, %v1541
    %v1543 = vsel %vm1531, %v1542, 0.0
    %v1544 = vrot.slane %v1543, 4
    %v1545 = vadd.f32 %v1543, %v1544
    %v1546 = vrot.slane %v1545, 2
    %v1547 = vadd.f32 %v1545, %v1546
    %v1548 = vrot.slane %v1547, 1
    %v1549 = vadd.f32 %v1547, %v1548
    %v1550 = vmul.f32 %v1549, 0.33333334
    %v1551 = vadd.f32 %v1550, 1e-05
    %v1552 = vrsqrt.pop %v1551
    %v1553 = vmul.f32 %v1541, %v1552
    %v1554 = vld [vmem:[%s6] sm:$0x1]
    %v1556 = vlaneseq
    %v1557 = vshrl.u32 %v1556, 7
    %v1558 = vsub.s32 0, %v1557
    %v1559 = vrot.slane %v1554, %v1558
    %v1561 = vmul.f32 %v1559, %v1553
    %v1562 = vld [vmem:[%s7] sm:$0x1]
    %v1564 = vlaneseq
    %v1565 = vshrl.u32 %v1564, 7
    %v1566 = vsub.s32 0, %v1565
    %v1567 = vrot.slane %v1562, %v1566
    %v1569 = vadd.f32 %v1561, %v1567
    %v1570 = vtanh.pop %v1569
    %s1571 = scalar_lea.vmem [#allocation8], 128
    %v1572 = vld [vmem:[%s1571] sm:$0xff]
    %v1573 = vld [vmem:[%s1571 + $0x8] sm:$0xff]
    %v1574 = vld [vmem:[%s1571 + $0x10] sm:$0xff]
    %v1575 = vld [vmem:[%s1571 + $0x18] sm:$0xff]
    %v1576 = vld [vmem:[%s1571 + $0x20] sm:$0xff]
    %v1577 = vld [vmem:[%s1571 + $0x28] sm:$0xff]
    %v1578 = vld [vmem:[%s1571 + $0x30] sm:$0xff]
    %v1579 = vld [vmem:[%s1571 + $0x38] sm:$0xff]
    %v1580 = vld [vmem:[%s1571 + $0x40] sm:$0xff]
    %v1581 = vld [vmem:[%s1571 + $0x48] sm:$0xff]
    %v1582 = vld [vmem:[%s1571 + $0x50] sm:$0xff]
    %v1583 = vld [vmem:[%s1571 + $0x58] sm:$0xff]
    %v1584 = vld [vmem:[%s1571 + $0x60] sm:$0xff]
    %v1585 = vld [vmem:[%s1571 + $0x68] sm:$0xff]
    %v1586 = vld [vmem:[%s1571 + $0x70] sm:$0xff]
    %v1587 = vld [vmem:[%s1571 + $0x78] sm:$0xff]
    %s1588 = scalar_lea.vmem %s5, 1
    %v1589 = vld [vmem:[%s1588] sm:$0x1]
    %v1591 = vlaneseq
    %v1592 = vshrl.u32 %v1591, 7
    %v1593 = vsub.s32 0, %v1592
    %v1594 = vrot.slane %v1589, %v1593
    %1596 = vmatprep.subr.mxu0 0.0
    %1597 = vmatpush1.msra.mxu0 %v1587
    %1598 = vmatprep.subr.mxu0 0.0
    %1599 = vmatpush1.msra.mxu0 %v1586
    %1600 = vmatprep.subr.mxu0 0.0
    %1601 = vmatpush1.msra.mxu0 %v1585
    %1602 = vmatprep.subr.mxu0 0.0
    %1603 = vmatpush1.msra.mxu0 %v1584
    %1604 = vmatprep.subr.mxu0 0.0
    %1605 = vmatpush1.msra.mxu0 %v1583
    %1606 = vmatprep.subr.mxu0 0.0
    %1607 = vmatpush1.msra.mxu0 %v1582
    %1608 = vmatprep.subr.mxu0 0.0
    %1609 = vmatpush1.msra.mxu0 %v1581
    %1610 = vmatprep.subr.mxu0 0.0
    %1611 = vmatpush1.msra.mxu0 %v1580
    %1612 = vmatprep.subr.mxu0 0.0
    %1613 = vmatpush1.msra.mxu0 %v1579
    %1614 = vmatprep.subr.mxu0 0.0
    %1615 = vmatpush1.msra.mxu0 %v1578
    %1616 = vmatprep.subr.mxu0 0.0
    %1617 = vmatpush1.msra.mxu0 %v1577
    %1618 = vmatprep.subr.mxu0 0.0
    %1619 = vmatpush1.msra.mxu0 %v1576
    %1620 = vmatprep.subr.mxu0 0.0
    %1621 = vmatpush1.msra.mxu0 %v1575
    %1622 = vmatprep.subr.mxu0 0.0
    %1623 = vmatpush1.msra.mxu0 %v1574
    %1624 = vmatprep.subr.mxu0 0.0
    %1625 = vmatpush1.msra.mxu0 %v1573
    %1626 = vmatprep.subr.mxu0 0.0
    %1627 = vmatpush1.msra.mxu0 %v1572
    %1628 = vmatprep.subr.mxu0 0.0
    %1629 = vmatpush2.msra.mxu0 0.0
    %1630 = vmatprep.subr.mxu0 0.0
    %1631 = vmatpush2.msra.mxu0 0.0
    %1632 = vmatprep.subr.mxu0 0.0
    %1633 = vmatpush2.msra.mxu0 0.0
    %1634 = vmatprep.subr.mxu0 0.0
    %1635 = vmatpush2.msra.mxu0 0.0
    %1636 = vmatprep.subr.mxu0 0.0
    %1637 = vmatpush2.msra.mxu0 0.0
    %1638 = vmatprep.subr.mxu0 0.0
    %1639 = vmatpush2.msra.mxu0 0.0
    %1640 = vmatprep.subr.mxu0 0.0
    %1641 = vmatpush2.msra.mxu0 0.0
    %1642 = vmatprep.subr.mxu0 0.0
    %1643 = vmatpush2.msra.mxu0 0.0
    %1644 = vmatprep.subr.mxu0 0.0
    %1645 = vmatpush2.msra.mxu0 0.0
    %1646 = vmatprep.subr.mxu0 0.0
    %1647 = vmatpush2.msra.mxu0 0.0
    %1648 = vmatprep.subr.mxu0 0.0
    %1649 = vmatpush2.msra.mxu0 0.0
    %1650 = vmatprep.subr.mxu0 0.0
    %1651 = vmatpush2.msra.mxu0 0.0
    %1652 = vmatprep.subr.mxu0 0.0
    %1653 = vmatpush2.msra.mxu0 0.0
    %1654 = vmatprep.subr.mxu0 0.0
    %1655 = vmatpush2.msra.mxu0 0.0
    %1656 = vmatprep.subr.mxu0 0.0
    %1657 = vmatpush2.msra.mxu0 0.0
    %1658 = vmatprep.subr.mxu0 0.0
    %1659 = vmatpush2.msra.mxu0 0.0
    %1660 = vmatprep.mubr.f32.mxu0 0.0
    %1661 = vmatmul.mubr.f32.gmra.mxu0 %v1570
    %v1662 = vpop.f32.mrf.mxu0
    %v1663 = vadd.f32 %v1594, %v1662
    %v1664 = vpop.f32.mrf.mxu0
    %1665 = vdwg.mxu0
    %v1666 = vsel %vm1531, %v1663, 0.0
    %v1667 = vrot.slane %v1666, 4
    %v1668 = vadd.f32 %v1666, %v1667
    %v1669 = vrot.slane %v1668, 2
    %v1670 = vadd.f32 %v1668, %v1669
    %v1671 = vrot.slane %v1670, 1
    %v1672 = vadd.f32 %v1670, %v1671
    %v1673 = vmul.f32 %v1672, %v1539
    %v1674 = vsub.f32 %v1663, %v1673
    %v1675 = vmul.f32 %v1674, %v1674
    %v1676 = vsel %vm1531, %v1675, 0.0
    %v1677 = vrot.slane %v1676, 4
    %v1678 = vadd.f32 %v1676, %v1677
    %v1679 = vrot.slane %v1678, 2
    %v1680 = vadd.f32 %v1678, %v1679
    %v1681 = vrot.slane %v1680, 1
    %v1682 = vadd.f32 %v1680, %v1681
    %v1683 = vmul.f32 %v1682, 0.33333334
    %v1684 = vadd.f32 %v1683, 1e-05
    %v1685 = vrsqrt.pop %v1684
    %v1686 = vmul.f32 %v1674, %v1685
    %s1687 = scalar_lea.vmem %s6, 1
    %v1688 = vld [vmem:[%s1687] sm:$0x1]
    %v1690 = vlaneseq
    %v1691 = vshrl.u32 %v1690, 7
    %v1692 = vsub.s32 0, %v1691
    %v1693 = vrot.slane %v1688, %v1692
    %v1695 = vmul.f32 %v1693, %v1686
    %s1696 = scalar_lea.vmem %s7, 1
    %v1697 = vld [vmem:[%s1696] sm:$0x1]
    %v1699 = vlaneseq
    %v1700 = vshrl.u32 %v1699, 7
    %v1701 = vsub.s32 0, %v1700
    %v1702 = vrot.slane %v1697, %v1701
    %v1704 = vadd.f32 %v1695, %v1702
    %v1705 = vtanh.pop %v1704
    %v1706 = vld [vmem:[#allocation10] sm:$0xff]
    %v1707 = vld [vmem:[#allocation10 + $0x8] sm:$0xff]
    %v1708 = vld [vmem:[#allocation10 + $0x10] sm:$0xff]
    %v1709 = vld [vmem:[#allocation10 + $0x18] sm:$0xff]
    %v1710 = vld [vmem:[#allocation10 + $0x20] sm:$0xff]
    %v1711 = vld [vmem:[#allocation10 + $0x28] sm:$0xff]
    %v1712 = vld [vmem:[#allocation10 + $0x30] sm:$0xff]
    %v1713 = vld [vmem:[#allocation10 + $0x38] sm:$0xff]
    %v1714 = vld [vmem:[#allocation10 + $0x40] sm:$0xff]
    %v1715 = vld [vmem:[#allocation10 + $0x48] sm:$0xff]
    %v1716 = vld [vmem:[#allocation10 + $0x50] sm:$0xff]
    %v1717 = vld [vmem:[#allocation10 + $0x58] sm:$0xff]
    %v1718 = vld [vmem:[#allocation10 + $0x60] sm:$0xff]
    %v1719 = vld [vmem:[#allocation10 + $0x68] sm:$0xff]
    %v1720 = vld [vmem:[#allocation10 + $0x70] sm:$0xff]
    %v1721 = vld [vmem:[#allocation10 + $0x78] sm:$0xff]
    %v1722 = vld [vmem:[%s9] sm:$0x1]
    %v1724 = vlaneseq
    %v1725 = vshrl.u32 %v1724, 7
    %v1726 = vsub.s32 0, %v1725
    %v1727 = vrot.slane %v1722, %v1726
    %1729 = vmatprep.subr.mxu0 0.0
    %1730 = vmatpush1.msra.mxu0 %v1721
    %1731 = vmatprep.subr.mxu0 0.0
    %1732 = vmatpush1.msra.mxu0 %v1720
    %1733 = vmatprep.subr.mxu0 0.0
    %1734 = vmatpush1.msra.mxu0 %v1719
    %1735 = vmatprep.subr.mxu0 0.0
    %1736 = vmatpush1.msra.mxu0 %v1718
    %1737 = vmatprep.subr.mxu0 0.0
    %1738 = vmatpush1.msra.mxu0 %v1717
    %1739 = vmatprep.subr.mxu0 0.0
    %1740 = vmatpush1.msra.mxu0 %v1716
    %1741 = vmatprep.subr.mxu0 0.0
    %1742 = vmatpush1.msra.mxu0 %v1715
    %1743 = vmatprep.subr.mxu0 0.0
    %1744 = vmatpush1.msra.mxu0 %v1714
    %1745 = vmatprep.subr.mxu0 0.0
    %1746 = vmatpush1.msra.mxu0 %v1713
    %1747 = vmatprep.subr.mxu0 0.0
    %1748 = vmatpush1.msra.mxu0 %v1712
    %1749 = vmatprep.subr.mxu0 0.0
    %1750 = vmatpush1.msra.mxu0 %v1711
    %1751 = vmatprep.subr.mxu0 0.0
    %1752 = vmatpush1.msra.mxu0 %v1710
    %1753 = vmatprep.subr.mxu0 0.0
    %1754 = vmatpush1.msra.mxu0 %v1709
    %1755 = vmatprep.subr.mxu0 0.0
    %1756 = vmatpush1.msra.mxu0 %v1708
    %1757 = vmatprep.subr.mxu0 0.0
    %1758 = vmatpush1.msra.mxu0 %v1707
    %1759 = vmatprep.subr.mxu0 0.0
    %1760 = vmatpush1.msra.mxu0 %v1706
    %1761 = vmatprep.subr.mxu0 0.0
    %1762 = vmatpush2.msra.mxu0 0.0
    %1763 = vmatprep.subr.mxu0 0.0
    %1764 = vmatpush2.msra.mxu0 0.0
    %1765 = vmatprep.subr.mxu0 0.0
    %1766 = vmatpush2.msra.mxu0 0.0
    %1767 = vmatprep.subr.mxu0 0.0
    %1768 = vmatpush2.msra.mxu0 0.0
    %1769 = vmatprep.subr.mxu0 0.0
    %1770 = vmatpush2.msra.mxu0 0.0
    %1771 = vmatprep.subr.mxu0 0.0
    %1772 = vmatpush2.msra.mxu0 0.0
    %1773 = vmatprep.subr.mxu0 0.0
    %1774 = vmatpush2.msra.mxu0 0.0
    %1775 = vmatprep.subr.mxu0 0.0
    %1776 = vmatpush2.msra.mxu0 0.0
    %1777 = vmatprep.subr.mxu0 0.0
    %1778 = vmatpush2.msra.mxu0 0.0
    %1779 = vmatprep.subr.mxu0 0.0
    %1780 = vmatpush2.msra.mxu0 0.0
    %1781 = vmatprep.subr.mxu0 0.0
    %1782 = vmatpush2.msra.mxu0 0.0
    %1783 = vmatprep.subr.mxu0 0.0
    %1784 = vmatpush2.msra.mxu0 0.0
    %1785 = vmatprep.subr.mxu0 0.0
    %1786 = vmatpush2.msra.mxu0 0.0
    %1787 = vmatprep.subr.mxu0 0.0
    %1788 = vmatpush2.msra.mxu0 0.0
    %1789 = vmatprep.subr.mxu0 0.0
    %1790 = vmatpush2.msra.mxu0 0.0
    %1791 = vmatprep.subr.mxu0 0.0
    %1792 = vmatpush2.msra.mxu0 0.0
    %1793 = vmatprep.mubr.f32.mxu0 0.0
    %1794 = vmatmul.mubr.f32.gmra.mxu0 %v1705
    %v1795 = vpop.f32.mrf.mxu0
    %v1796 = vadd.f32 %v1727, %v1795
    %v1797 = vpop.f32.mrf.mxu0
    %1798 = vdwg.mxu0
    %1799 = vst [vmem:[#allocation11] sm:$0xf] %v1796
    // Predicated region
    $region62: #{tpu_custom_call.1} parent=1 // pred_check
      _
    $region63: #{tpu_custom_call.1} parent=1 // pred_check_branch
      %1801 = sbr.rel (0) target = $region65
    $region64: #{tpu_custom_call.1} parent=1 // pred_region
      %s1803 = ssub.s32 64, 64
      %1804 = vsyncadd [#allocation4], %s1803
      %s1806 = sshll.u32 [#allocation11], 4
      %s1807 = int_to_ptr.vmem [resolvable:$true] %s1806
      %1809 = dma.vmem_to_hbm [thread:$0]  %s1807, 64, %s10, [#allocation4]
    $region65: #{tpu_custom_call.1} parent=1 // pred_fallthru
      _
    // Predicated region
    $region66: #{tpu_custom_call.1} parent=1 // pred_check
      _
    $region67: #{tpu_custom_call.1} parent=1 // pred_check_branch
      %1811 = sbr.rel (0) target = $region69
    $region68: #{tpu_custom_call.1} parent=1 // pred_region
      %1812 = dma.done [#allocation4], 64
    $region69: #{tpu_custom_call.1} parent=1 // pred_fallthru
      _
    %1813 = vsyncpa [#allocation3], 1
    %1814 = vsyncpa [#allocation6], 1
    %1815 = vsyncpa [#allocation9], 1
    %1816 = vsyncpa [#allocation4], 1

</llo_original>
